<compile_context>
chip_gen: v7x
topology: tpu7x:2x2x1
jax: 0.10.0
libtpu: 0.0.40
codegen_flags: <defaults>
</compile_context>

<pallas_src>
import functools

import jax
import jax.numpy as jnp
from jax.experimental import pallas as pl
from jax.experimental.pallas import tpu as pltpu

LN_EPS = 1e-5


def _csa_kernel(x_ref, w_ref, b_ref, o_ref, *, matmul_dtype):
    # x_ref, o_ref: (bb, C, L)   w_ref: (3C, C)   b_ref: (C, 1)
    bb, C, L = x_ref.shape

    w = w_ref[...]                      # already matmul_dtype if requested
    b = b_ref[...]                      # (C, 1) narrow operand, broadcast at add

    # Edge masks as a single (1, L) row; jnp.where broadcasts over sublanes.
    # Per-sample layout means there is no cross-sample leakage and no modulo.
    lane = jax.lax.broadcasted_iota(jnp.int32, (1, L), 1)
    kill_first = lane == 0              # left zero-pad: no x[l-1] tap at l = 0
    kill_last = lane == L - 1           # right zero-pad: no x[l+1] tap at l = L-1

    inv_count = 1.0 / (C * L)

    def conv(v):
        # v: (C, L).  Single stacked-tap matmul: rows [0:C) = tap(l-1),
        # [C:2C) = tap(l), [2C:3C) = tap(l+1).  Shifting commutes with a
        # column-wise matmul, so the +-1 taps become XLU rolls of the output.
        if matmul_dtype is not None:
            v = v.astype(matmul_dtype)
        p = jnp.dot(w, v, preferred_element_type=jnp.float32)        # (3C, L)
        p_prev = jnp.where(kill_first, 0.0,
                           pltpu.roll(p[0:C], shift=1, axis=1))
        p_next = jnp.where(kill_last, 0.0,
                           pltpu.roll(p[2 * C:3 * C], shift=L - 1, axis=1))
        return p_prev + p[C:2 * C] + p_next + b

    # Static per-sample loop (bb is small).  Each iteration is fully
    # independent: conv -> relu -> conv+residual -> relu -> per-sample LN.
    # NOTE: if bb grows (>= 8), restructure the LN as a shared sublane-first
    # reduction and a single full-width store instead of per-sample stores.
    for s in range(bb):
        x_s = x_ref[s]                                               # (C, L)
        h = jnp.maximum(conv(x_s), 0.0)                              # relu(conv(x))
        y = jnp.maximum(conv(h) + x_s, 0.0)                          # relu(conv(h)+x)

        # One-pass LayerNorm over the (C, L) slab, no affine params.
        total = jnp.sum(y)
        total_sq = jnp.sum(y * y)
        mean = total * inv_count
        var = total_sq * inv_count - mean * mean
        o_ref[s] = ((y - mean) * jax.lax.rsqrt(var + LN_EPS)).astype(o_ref.dtype)


def conv_self_attention(x, conv_w, conv_b, *, num_blocks=1, matmul_dtype=None,
                        core_parallel=False):
    """x: (N, C, L) float32; conv_w: (C, C, 3); conv_b: (C,).

    num_blocks: grid length.  Default 1 (right for single-TensorCore
      v5e/v6e: no per-step overhead, full lane width).  On v7x pass
      num_blocks=2 together with core_parallel=True to shard the batch across
      both TensorCores.
    matmul_dtype: e.g. jnp.bfloat16 to use the bf16 MXU operand path (all
      generations accept bf16 operands).  The win is register/bandwidth, not
      MXU speed; the bf16 path will not match the f32 reference to 1e-4.
    """
    N, C, L = x.shape
    assert N % num_blocks == 0, "batch must divide evenly across grid blocks"
    bb = N // num_blocks

    # Shared conv weights as one (3C, C) slab: rows = [tap0; tap1; tap2].
    # Tiny (3*C*C elements); callers reusing the weights can hoist this.
    w_stack = jnp.transpose(conv_w, (2, 0, 1)).reshape(3 * C, C)
    if matmul_dtype is not None:
        w_stack = w_stack.astype(matmul_dtype)   # cast once, in the wrapper
    b_col = conv_b.reshape(C, 1)

    kernel = functools.partial(_csa_kernel, matmul_dtype=matmul_dtype)

    if core_parallel:
        dim_sem = (pltpu.CORE_PARALLEL,)   # v7x: real 2-TC sharding of the grid
    else:
        dim_sem = ("arbitrary",)

    return pl.pallas_call(
        kernel,
        out_shape=jax.ShapeDtypeStruct((N, C, L), x.dtype),
        grid_spec=pltpu.PrefetchScalarGridSpec(
            num_scalar_prefetch=0,
            grid=(num_blocks,),
            in_specs=[
                pl.BlockSpec((bb, C, L), lambda g: (g, 0, 0)),   # native layout
                pl.BlockSpec((3 * C, C), lambda g: (0, 0)),      # VMEM-resident
                pl.BlockSpec((C, 1), lambda g: (0, 0)),
            ],
            out_specs=pl.BlockSpec((bb, C, L), lambda g: (g, 0, 0)),
        ),
        compiler_params=pltpu.CompilerParams(dimension_semantics=dim_sem),
    )(x, w_stack, b_col)


def _reference(x, conv_w, conv_b):
    """Pure-JAX reference mirroring the PyTorch forward."""
    def conv(v):
        out = jax.lax.conv_general_dilated(
            v, conv_w, window_strides=(1,), padding=((1, 1),),
            dimension_numbers=("NCH", "OIH", "NCH"))
        return out + conv_b[None, :, None]

    h = jax.nn.relu(conv(x))
    y = jax.nn.relu(conv(h) + x)
    mean = jnp.mean(y, axis=(1, 2), keepdims=True)
    var = jnp.mean((y - mean) ** 2, axis=(1, 2), keepdims=True)
    return (y - mean) * jax.lax.rsqrt(var + LN_EPS)


if __name__ == "__main__":
    # Small, module-consistent shapes: batch=4, input_dim (channels)=32,
    # sequence length=128, kernel_dim=3.
    N, C, L, K = 4, 32, 128, 3

    key = jax.random.PRNGKey(0)
    kx, kw, kb = jax.random.split(key, 3)

    x = jax.random.normal(kx, (N, C, L), dtype=jnp.float32)

    # Deterministic synthetic init mirroring nn.init.kaiming_uniform_ (a=0, fan_in)
    fan_in = C * K
    w_bound = (6.0 / fan_in) ** 0.5
    conv_w = jax.random.uniform(kw, (C, C, K), minval=-w_bound, maxval=w_bound,
                                dtype=jnp.float32)
    b_bound = 1.0 / (fan_in ** 0.5)
    conv_b = jax.random.uniform(kb, (C,), minval=-b_bound, maxval=b_bound,
                                dtype=jnp.float32)
    # NOTE: self.dropout and self.cls are defined in __init__ but unused in forward.

    out = conv_self_attention(x, conv_w, conv_b)   # defaults: grid=1, f32 matmul
    out = jax.block_until_ready(out)

    ref = _reference(x, conv_w, conv_b)
    assert out.shape == (N, C, L)
    assert jnp.allclose(out, ref, rtol=1e-4, atol=1e-4), "mismatch vs reference"

    print("KERNEL_OK")
</pallas_src>

<mosaic_0001>
module attributes {stable_mosaic.version = 11 : i64} {
  func.func @_csa_kernel(%arg0: i32, %arg1: memref<4x32x128xf32, #tpu.memory_space<vmem>>, %arg2: memref<96x32xf32, #tpu.memory_space<vmem>>, %arg3: memref<32x1xf32, #tpu.memory_space<vmem>>, %arg4: memref<4x32x128xf32, #tpu.memory_space<vmem>>) attributes {dimension_semantics = [#tpu.dimension_semantics<arbitrary>], iteration_bounds = array<i64: 1>, scalar_prefetch = 0 : i64, scratch_operands = 0 : i64, tpu.core_type = #tpu.core_type<tc>, window_params = [{transform_indices = @transform_0, window_bounds = array<i64: 4, 32, 128>}, {pipeline_mode = #tpu.pipeline_mode<synchronous>, transform_indices = @transform_1, window_bounds = array<i64: 96, 32>}, {pipeline_mode = #tpu.pipeline_mode<synchronous>, transform_indices = @transform_2, window_bounds = array<i64: 32, 1>}, {transform_indices = @transform_3, window_bounds = array<i64: 4, 32, 128>}]} {
    %c0 = arith.constant 0 : index
    %c0_0 = arith.constant 0 : index
    %0 = vector.load %arg2[%c0, %c0_0] : memref<96x32xf32, #tpu.memory_space<vmem>>, vector<96x32xf32>
    %c0_1 = arith.constant 0 : index
    %c0_2 = arith.constant 0 : index
    %1 = vector.load %arg3[%c0_1, %c0_2] : memref<32x1xf32, #tpu.memory_space<vmem>>, vector<32x1xf32>
    %2 = tpu.iota {dimensions = array<i32: 1>} : vector<1x128xi32>
    %c0_i32 = arith.constant 0 : i32
    %3 = vector.broadcast %c0_i32 : i32 to vector<1x128xi32>
    %4 = arith.cmpi eq, %2, %3 : vector<1x128xi32>
    %c127_i32 = arith.constant 127 : i32
    %5 = vector.broadcast %c127_i32 : i32 to vector<1x128xi32>
    %6 = arith.cmpi eq, %2, %5 : vector<1x128xi32>
    %c0_3 = arith.constant 0 : index
    %c0_4 = arith.constant 0 : index
    %c0_5 = arith.constant 0 : index
    %7 = vector.load %arg1[%c0_3, %c0_4, %c0_5] : memref<4x32x128xf32, #tpu.memory_space<vmem>>, vector<1x32x128xf32>
    %8 = vector.shape_cast %7 : vector<1x32x128xf32> to vector<32x128xf32>
    %cst = arith.constant dense<0.000000e+00> : vector<96x128xf32>
    %9 = tpu.matmul %0, %8, %cst {dimension_numbers = #tpu.dot_dimension_numbers<[1], [0], [0], [1], [0, 0, 1, 1], [], []>} : vector<96x32xf32>, vector<32x128xf32>, vector<96x128xf32> -> vector<96x128xf32>
    %10 = vector.extract_strided_slice %9 {offsets = [0, 0], sizes = [32, 128], strides = [1, 1]} : vector<96x128xf32> to vector<32x128xf32>
    %c1_i32 = arith.constant 1 : i32
    %11 = tpu.dynamic_rotate %10 by %c1_i32 dim 1 : vector<32x128xf32>, i32 -> vector<32x128xf32>
    %cst_6 = arith.constant 0.000000e+00 : f32
    %12 = vector.shape_cast %4 : vector<1x128xi1> to vector<1x128xi1>
    %13 = vector.broadcast %12 : vector<1x128xi1> to vector<32x128xi1>
    %14 = vector.broadcast %cst_6 : f32 to vector<32x128xf32>
    %15 = arith.select %13, %14, %11 : vector<32x128xi1>, vector<32x128xf32>
    %16 = vector.extract_strided_slice %9 {offsets = [64, 0], sizes = [32, 128], strides = [1, 1]} : vector<96x128xf32> to vector<32x128xf32>
    %c127_i32_7 = arith.constant 127 : i32
    %17 = tpu.dynamic_rotate %16 by %c127_i32_7 dim 1 : vector<32x128xf32>, i32 -> vector<32x128xf32>
    %cst_8 = arith.constant 0.000000e+00 : f32
    %18 = vector.shape_cast %6 : vector<1x128xi1> to vector<1x128xi1>
    %19 = vector.broadcast %18 : vector<1x128xi1> to vector<32x128xi1>
    %20 = vector.broadcast %cst_8 : f32 to vector<32x128xf32>
    %21 = arith.select %19, %20, %17 : vector<32x128xi1>, vector<32x128xf32>
    %22 = vector.extract_strided_slice %9 {offsets = [32, 0], sizes = [32, 128], strides = [1, 1]} : vector<96x128xf32> to vector<32x128xf32>
    %23 = arith.addf %15, %22 : vector<32x128xf32>
    %24 = arith.addf %23, %21 : vector<32x128xf32>
    %25 = vector.broadcast %1 : vector<32x1xf32> to vector<32x128xf32>
    %26 = arith.addf %24, %25 : vector<32x128xf32>
    %cst_9 = arith.constant 0.000000e+00 : f32
    %27 = vector.broadcast %cst_9 : f32 to vector<32x128xf32>
    %28 = arith.maximumf %26, %27 : vector<32x128xf32>
    %cst_10 = arith.constant dense<0.000000e+00> : vector<96x128xf32>
    %29 = tpu.matmul %0, %28, %cst_10 {dimension_numbers = #tpu.dot_dimension_numbers<[1], [0], [0], [1], [0, 0, 1, 1], [], []>} : vector<96x32xf32>, vector<32x128xf32>, vector<96x128xf32> -> vector<96x128xf32>
    %30 = vector.extract_strided_slice %29 {offsets = [0, 0], sizes = [32, 128], strides = [1, 1]} : vector<96x128xf32> to vector<32x128xf32>
    %c1_i32_11 = arith.constant 1 : i32
    %31 = tpu.dynamic_rotate %30 by %c1_i32_11 dim 1 : vector<32x128xf32>, i32 -> vector<32x128xf32>
    %cst_12 = arith.constant 0.000000e+00 : f32
    %32 = vector.shape_cast %4 : vector<1x128xi1> to vector<1x128xi1>
    %33 = vector.broadcast %32 : vector<1x128xi1> to vector<32x128xi1>
    %34 = vector.broadcast %cst_12 : f32 to vector<32x128xf32>
    %35 = arith.select %33, %34, %31 : vector<32x128xi1>, vector<32x128xf32>
    %36 = vector.extract_strided_slice %29 {offsets = [64, 0], sizes = [32, 128], strides = [1, 1]} : vector<96x128xf32> to vector<32x128xf32>
    %c127_i32_13 = arith.constant 127 : i32
    %37 = tpu.dynamic_rotate %36 by %c127_i32_13 dim 1 : vector<32x128xf32>, i32 -> vector<32x128xf32>
    %cst_14 = arith.constant 0.000000e+00 : f32
    %38 = vector.shape_cast %6 : vector<1x128xi1> to vector<1x128xi1>
    %39 = vector.broadcast %38 : vector<1x128xi1> to vector<32x128xi1>
    %40 = vector.broadcast %cst_14 : f32 to vector<32x128xf32>
    %41 = arith.select %39, %40, %37 : vector<32x128xi1>, vector<32x128xf32>
    %42 = vector.extract_strided_slice %29 {offsets = [32, 0], sizes = [32, 128], strides = [1, 1]} : vector<96x128xf32> to vector<32x128xf32>
    %43 = arith.addf %35, %42 : vector<32x128xf32>
    %44 = arith.addf %43, %41 : vector<32x128xf32>
    %45 = vector.broadcast %1 : vector<32x1xf32> to vector<32x128xf32>
    %46 = arith.addf %44, %45 : vector<32x128xf32>
    %47 = arith.addf %46, %8 : vector<32x128xf32>
    %cst_15 = arith.constant 0.000000e+00 : f32
    %48 = vector.broadcast %cst_15 : f32 to vector<32x128xf32>
    %49 = arith.maximumf %47, %48 : vector<32x128xf32>
    %50 = vector.shape_cast %49 : vector<32x128xf32> to vector<1x32x128xf32>
    %cst_16 = arith.constant dense<0.000000e+00> : vector<1xf32>
    %51 = vector.multi_reduction <add>, %50, %cst_16 [1, 2] : vector<1x32x128xf32> to vector<1xf32>
    %52 = vector.shape_cast %51 : vector<1xf32> to vector<1x1x1xf32>
    %53 = vector.extract %52[0, 0, 0] : f32 from vector<1x1x1xf32>
    %54 = arith.mulf %49, %49 : vector<32x128xf32>
    %55 = vector.shape_cast %54 : vector<32x128xf32> to vector<1x32x128xf32>
    %cst_17 = arith.constant dense<0.000000e+00> : vector<1xf32>
    %56 = vector.multi_reduction <add>, %55, %cst_17 [1, 2] : vector<1x32x128xf32> to vector<1xf32>
    %57 = vector.shape_cast %56 : vector<1xf32> to vector<1x1x1xf32>
    %58 = vector.extract %57[0, 0, 0] : f32 from vector<1x1x1xf32>
    %cst_18 = arith.constant 2.44140625E-4 : f32
    %59 = arith.mulf %53, %cst_18 : f32
    %cst_19 = arith.constant 2.44140625E-4 : f32
    %60 = arith.mulf %58, %cst_19 : f32
    %61 = arith.mulf %59, %59 : f32
    %62 = arith.subf %60, %61 : f32
    %63 = vector.broadcast %59 : f32 to vector<32x128xf32>
    %64 = arith.subf %49, %63 : vector<32x128xf32>
    %cst_20 = arith.constant 9.99999974E-6 : f32
    %65 = arith.addf %62, %cst_20 : f32
    %66 = math.rsqrt %65 : f32
    %67 = vector.broadcast %66 : f32 to vector<32x128xf32>
    %68 = arith.mulf %64, %67 : vector<32x128xf32>
    %c0_21 = arith.constant 0 : index
    %c0_22 = arith.constant 0 : index
    %c0_23 = arith.constant 0 : index
    %69 = vector.load %arg4[%c0_21, %c0_22, %c0_23] : memref<4x32x128xf32, #tpu.memory_space<vmem>>, vector<1x32x128xf32>
    %70 = vector.shape_cast %69 : vector<1x32x128xf32> to vector<32x128xf32>
    %71 = vector.shape_cast %68 : vector<32x128xf32> to vector<1x32x128xf32>
    tpu.vector_store %arg4[%c0_21, %c0_22, %c0_23], %71 {strides = array<i32>} : memref<4x32x128xf32, #tpu.memory_space<vmem>>, vector<1x32x128xf32>,
    %c1 = arith.constant 1 : index
    %c0_24 = arith.constant 0 : index
    %c0_25 = arith.constant 0 : index
    %72 = vector.load %arg1[%c1, %c0_24, %c0_25] : memref<4x32x128xf32, #tpu.memory_space<vmem>>, vector<1x32x128xf32>
    %73 = vector.shape_cast %72 : vector<1x32x128xf32> to vector<32x128xf32>
    %cst_26 = arith.constant dense<0.000000e+00> : vector<96x128xf32>
    %74 = tpu.matmul %0, %73, %cst_26 {dimension_numbers = #tpu.dot_dimension_numbers<[1], [0], [0], [1], [0, 0, 1, 1], [], []>} : vector<96x32xf32>, vector<32x128xf32>, vector<96x128xf32> -> vector<96x128xf32>
    %75 = vector.extract_strided_slice %74 {offsets = [0, 0], sizes = [32, 128], strides = [1, 1]} : vector<96x128xf32> to vector<32x128xf32>
    %c1_i32_27 = arith.constant 1 : i32
    %76 = tpu.dynamic_rotate %75 by %c1_i32_27 dim 1 : vector<32x128xf32>, i32 -> vector<32x128xf32>
    %cst_28 = arith.constant 0.000000e+00 : f32
    %77 = vector.shape_cast %4 : vector<1x128xi1> to vector<1x128xi1>
    %78 = vector.broadcast %77 : vector<1x128xi1> to vector<32x128xi1>
    %79 = vector.broadcast %cst_28 : f32 to vector<32x128xf32>
    %80 = arith.select %78, %79, %76 : vector<32x128xi1>, vector<32x128xf32>
    %81 = vector.extract_strided_slice %74 {offsets = [64, 0], sizes = [32, 128], strides = [1, 1]} : vector<96x128xf32> to vector<32x128xf32>
    %c127_i32_29 = arith.constant 127 : i32
    %82 = tpu.dynamic_rotate %81 by %c127_i32_29 dim 1 : vector<32x128xf32>, i32 -> vector<32x128xf32>
    %cst_30 = arith.constant 0.000000e+00 : f32
    %83 = vector.shape_cast %6 : vector<1x128xi1> to vector<1x128xi1>
    %84 = vector.broadcast %83 : vector<1x128xi1> to vector<32x128xi1>
    %85 = vector.broadcast %cst_30 : f32 to vector<32x128xf32>
    %86 = arith.select %84, %85, %82 : vector<32x128xi1>, vector<32x128xf32>
    %87 = vector.extract_strided_slice %74 {offsets = [32, 0], sizes = [32, 128], strides = [1, 1]} : vector<96x128xf32> to vector<32x128xf32>
    %88 = arith.addf %80, %87 : vector<32x128xf32>
    %89 = arith.addf %88, %86 : vector<32x128xf32>
    %90 = vector.broadcast %1 : vector<32x1xf32> to vector<32x128xf32>
    %91 = arith.addf %89, %90 : vector<32x128xf32>
    %cst_31 = arith.constant 0.000000e+00 : f32
    %92 = vector.broadcast %cst_31 : f32 to vector<32x128xf32>
    %93 = arith.maximumf %91, %92 : vector<32x128xf32>
    %cst_32 = arith.constant dense<0.000000e+00> : vector<96x128xf32>
    %94 = tpu.matmul %0, %93, %cst_32 {dimension_numbers = #tpu.dot_dimension_numbers<[1], [0], [0], [1], [0, 0, 1, 1], [], []>} : vector<96x32xf32>, vector<32x128xf32>, vector<96x128xf32> -> vector<96x128xf32>
    %95 = vector.extract_strided_slice %94 {offsets = [0, 0], sizes = [32, 128], strides = [1, 1]} : vector<96x128xf32> to vector<32x128xf32>
    %c1_i32_33 = arith.constant 1 : i32
    %96 = tpu.dynamic_rotate %95 by %c1_i32_33 dim 1 : vector<32x128xf32>, i32 -> vector<32x128xf32>
    %cst_34 = arith.constant 0.000000e+00 : f32
    %97 = vector.shape_cast %4 : vector<1x128xi1> to vector<1x128xi1>
    %98 = vector.broadcast %97 : vector<1x128xi1> to vector<32x128xi1>
    %99 = vector.broadcast %cst_34 : f32 to vector<32x128xf32>
    %100 = arith.select %98, %99, %96 : vector<32x128xi1>, vector<32x128xf32>
    %101 = vector.extract_strided_slice %94 {offsets = [64, 0], sizes = [32, 128], strides = [1, 1]} : vector<96x128xf32> to vector<32x128xf32>
    %c127_i32_35 = arith.constant 127 : i32
    %102 = tpu.dynamic_rotate %101 by %c127_i32_35 dim 1 : vector<32x128xf32>, i32 -> vector<32x128xf32>
    %cst_36 = arith.constant 0.000000e+00 : f32
    %103 = vector.shape_cast %6 : vector<1x128xi1> to vector<1x128xi1>
    %104 = vector.broadcast %103 : vector<1x128xi1> to vector<32x128xi1>
    %105 = vector.broadcast %cst_36 : f32 to vector<32x128xf32>
    %106 = arith.select %104, %105, %102 : vector<32x128xi1>, vector<32x128xf32>
    %107 = vector.extract_strided_slice %94 {offsets = [32, 0], sizes = [32, 128], strides = [1, 1]} : vector<96x128xf32> to vector<32x128xf32>
    %108 = arith.addf %100, %107 : vector<32x128xf32>
    %109 = arith.addf %108, %106 : vector<32x128xf32>
    %110 = vector.broadcast %1 : vector<32x1xf32> to vector<32x128xf32>
    %111 = arith.addf %109, %110 : vector<32x128xf32>
    %112 = arith.addf %111, %73 : vector<32x128xf32>
    %cst_37 = arith.constant 0.000000e+00 : f32
    %113 = vector.broadcast %cst_37 : f32 to vector<32x128xf32>
    %114 = arith.maximumf %112, %113 : vector<32x128xf32>
    %115 = vector.shape_cast %114 : vector<32x128xf32> to vector<1x32x128xf32>
    %cst_38 = arith.constant dense<0.000000e+00> : vector<1xf32>
    %116 = vector.multi_reduction <add>, %115, %cst_38 [1, 2] : vector<1x32x128xf32> to vector<1xf32>
    %117 = vector.shape_cast %116 : vector<1xf32> to vector<1x1x1xf32>
    %118 = vector.extract %117[0, 0, 0] : f32 from vector<1x1x1xf32>
    %119 = arith.mulf %114, %114 : vector<32x128xf32>
    %120 = vector.shape_cast %119 : vector<32x128xf32> to vector<1x32x128xf32>
    %cst_39 = arith.constant dense<0.000000e+00> : vector<1xf32>
    %121 = vector.multi_reduction <add>, %120, %cst_39 [1, 2] : vector<1x32x128xf32> to vector<1xf32>
    %122 = vector.shape_cast %121 : vector<1xf32> to vector<1x1x1xf32>
    %123 = vector.extract %122[0, 0, 0] : f32 from vector<1x1x1xf32>
    %cst_40 = arith.constant 2.44140625E-4 : f32
    %124 = arith.mulf %118, %cst_40 : f32
    %cst_41 = arith.constant 2.44140625E-4 : f32
    %125 = arith.mulf %123, %cst_41 : f32
    %126 = arith.mulf %124, %124 : f32
    %127 = arith.subf %125, %126 : f32
    %128 = vector.broadcast %124 : f32 to vector<32x128xf32>
    %129 = arith.subf %114, %128 : vector<32x128xf32>
    %cst_42 = arith.constant 9.99999974E-6 : f32
    %130 = arith.addf %127, %cst_42 : f32
    %131 = math.rsqrt %130 : f32
    %132 = vector.broadcast %131 : f32 to vector<32x128xf32>
    %133 = arith.mulf %129, %132 : vector<32x128xf32>
    %c1_43 = arith.constant 1 : index
    %c0_44 = arith.constant 0 : index
    %c0_45 = arith.constant 0 : index
    %134 = vector.load %arg4[%c1_43, %c0_44, %c0_45] : memref<4x32x128xf32, #tpu.memory_space<vmem>>, vector<1x32x128xf32>
    %135 = vector.shape_cast %134 : vector<1x32x128xf32> to vector<32x128xf32>
    %136 = vector.shape_cast %133 : vector<32x128xf32> to vector<1x32x128xf32>
    tpu.vector_store %arg4[%c1_43, %c0_44, %c0_45], %136 {strides = array<i32>} : memref<4x32x128xf32, #tpu.memory_space<vmem>>, vector<1x32x128xf32>,
    %c2 = arith.constant 2 : index
    %c0_46 = arith.constant 0 : index
    %c0_47 = arith.constant 0 : index
    %137 = vector.load %arg1[%c2, %c0_46, %c0_47] : memref<4x32x128xf32, #tpu.memory_space<vmem>>, vector<1x32x128xf32>
    %138 = vector.shape_cast %137 : vector<1x32x128xf32> to vector<32x128xf32>
    %cst_48 = arith.constant dense<0.000000e+00> : vector<96x128xf32>
    %139 = tpu.matmul %0, %138, %cst_48 {dimension_numbers = #tpu.dot_dimension_numbers<[1], [0], [0], [1], [0, 0, 1, 1], [], []>} : vector<96x32xf32>, vector<32x128xf32>, vector<96x128xf32> -> vector<96x128xf32>
    %140 = vector.extract_strided_slice %139 {offsets = [0, 0], sizes = [32, 128], strides = [1, 1]} : vector<96x128xf32> to vector<32x128xf32>
    %c1_i32_49 = arith.constant 1 : i32
    %141 = tpu.dynamic_rotate %140 by %c1_i32_49 dim 1 : vector<32x128xf32>, i32 -> vector<32x128xf32>
    %cst_50 = arith.constant 0.000000e+00 : f32
    %142 = vector.shape_cast %4 : vector<1x128xi1> to vector<1x128xi1>
    %143 = vector.broadcast %142 : vector<1x128xi1> to vector<32x128xi1>
    %144 = vector.broadcast %cst_50 : f32 to vector<32x128xf32>
    %145 = arith.select %143, %144, %141 : vector<32x128xi1>, vector<32x128xf32>
    %146 = vector.extract_strided_slice %139 {offsets = [64, 0], sizes = [32, 128], strides = [1, 1]} : vector<96x128xf32> to vector<32x128xf32>
    %c127_i32_51 = arith.constant 127 : i32
    %147 = tpu.dynamic_rotate %146 by %c127_i32_51 dim 1 : vector<32x128xf32>, i32 -> vector<32x128xf32>
    %cst_52 = arith.constant 0.000000e+00 : f32
    %148 = vector.shape_cast %6 : vector<1x128xi1> to vector<1x128xi1>
    %149 = vector.broadcast %148 : vector<1x128xi1> to vector<32x128xi1>
    %150 = vector.broadcast %cst_52 : f32 to vector<32x128xf32>
    %151 = arith.select %149, %150, %147 : vector<32x128xi1>, vector<32x128xf32>
    %152 = vector.extract_strided_slice %139 {offsets = [32, 0], sizes = [32, 128], strides = [1, 1]} : vector<96x128xf32> to vector<32x128xf32>
    %153 = arith.addf %145, %152 : vector<32x128xf32>
    %154 = arith.addf %153, %151 : vector<32x128xf32>
    %155 = vector.broadcast %1 : vector<32x1xf32> to vector<32x128xf32>
    %156 = arith.addf %154, %155 : vector<32x128xf32>
    %cst_53 = arith.constant 0.000000e+00 : f32
    %157 = vector.broadcast %cst_53 : f32 to vector<32x128xf32>
    %158 = arith.maximumf %156, %157 : vector<32x128xf32>
    %cst_54 = arith.constant dense<0.000000e+00> : vector<96x128xf32>
    %159 = tpu.matmul %0, %158, %cst_54 {dimension_numbers = #tpu.dot_dimension_numbers<[1], [0], [0], [1], [0, 0, 1, 1], [], []>} : vector<96x32xf32>, vector<32x128xf32>, vector<96x128xf32> -> vector<96x128xf32>
    %160 = vector.extract_strided_slice %159 {offsets = [0, 0], sizes = [32, 128], strides = [1, 1]} : vector<96x128xf32> to vector<32x128xf32>
    %c1_i32_55 = arith.constant 1 : i32
    %161 = tpu.dynamic_rotate %160 by %c1_i32_55 dim 1 : vector<32x128xf32>, i32 -> vector<32x128xf32>
    %cst_56 = arith.constant 0.000000e+00 : f32
    %162 = vector.shape_cast %4 : vector<1x128xi1> to vector<1x128xi1>
    %163 = vector.broadcast %162 : vector<1x128xi1> to vector<32x128xi1>
    %164 = vector.broadcast %cst_56 : f32 to vector<32x128xf32>
    %165 = arith.select %163, %164, %161 : vector<32x128xi1>, vector<32x128xf32>
    %166 = vector.extract_strided_slice %159 {offsets = [64, 0], sizes = [32, 128], strides = [1, 1]} : vector<96x128xf32> to vector<32x128xf32>
    %c127_i32_57 = arith.constant 127 : i32
    %167 = tpu.dynamic_rotate %166 by %c127_i32_57 dim 1 : vector<32x128xf32>, i32 -> vector<32x128xf32>
    %cst_58 = arith.constant 0.000000e+00 : f32
    %168 = vector.shape_cast %6 : vector<1x128xi1> to vector<1x128xi1>
    %169 = vector.broadcast %168 : vector<1x128xi1> to vector<32x128xi1>
    %170 = vector.broadcast %cst_58 : f32 to vector<32x128xf32>
    %171 = arith.select %169, %170, %167 : vector<32x128xi1>, vector<32x128xf32>
    %172 = vector.extract_strided_slice %159 {offsets = [32, 0], sizes = [32, 128], strides = [1, 1]} : vector<96x128xf32> to vector<32x128xf32>
    %173 = arith.addf %165, %172 : vector<32x128xf32>
    %174 = arith.addf %173, %171 : vector<32x128xf32>
    %175 = vector.broadcast %1 : vector<32x1xf32> to vector<32x128xf32>
    %176 = arith.addf %174, %175 : vector<32x128xf32>
    %177 = arith.addf %176, %138 : vector<32x128xf32>
    %cst_59 = arith.constant 0.000000e+00 : f32
    %178 = vector.broadcast %cst_59 : f32 to vector<32x128xf32>
    %179 = arith.maximumf %177, %178 : vector<32x128xf32>
    %180 = vector.shape_cast %179 : vector<32x128xf32> to vector<1x32x128xf32>
    %cst_60 = arith.constant dense<0.000000e+00> : vector<1xf32>
    %181 = vector.multi_reduction <add>, %180, %cst_60 [1, 2] : vector<1x32x128xf32> to vector<1xf32>
    %182 = vector.shape_cast %181 : vector<1xf32> to vector<1x1x1xf32>
    %183 = vector.extract %182[0, 0, 0] : f32 from vector<1x1x1xf32>
    %184 = arith.mulf %179, %179 : vector<32x128xf32>
    %185 = vector.shape_cast %184 : vector<32x128xf32> to vector<1x32x128xf32>
    %cst_61 = arith.constant dense<0.000000e+00> : vector<1xf32>
    %186 = vector.multi_reduction <add>, %185, %cst_61 [1, 2] : vector<1x32x128xf32> to vector<1xf32>
    %187 = vector.shape_cast %186 : vector<1xf32> to vector<1x1x1xf32>
    %188 = vector.extract %187[0, 0, 0] : f32 from vector<1x1x1xf32>
    %cst_62 = arith.constant 2.44140625E-4 : f32
    %189 = arith.mulf %183, %cst_62 : f32
    %cst_63 = arith.constant 2.44140625E-4 : f32
    %190 = arith.mulf %188, %cst_63 : f32
    %191 = arith.mulf %189, %189 : f32
    %192 = arith.subf %190, %191 : f32
    %193 = vector.broadcast %189 : f32 to vector<32x128xf32>
    %194 = arith.subf %179, %193 : vector<32x128xf32>
    %cst_64 = arith.constant 9.99999974E-6 : f32
    %195 = arith.addf %192, %cst_64 : f32
    %196 = math.rsqrt %195 : f32
    %197 = vector.broadcast %196 : f32 to vector<32x128xf32>
    %198 = arith.mulf %194, %197 : vector<32x128xf32>
    %c2_65 = arith.constant 2 : index
    %c0_66 = arith.constant 0 : index
    %c0_67 = arith.constant 0 : index
    %199 = vector.load %arg4[%c2_65, %c0_66, %c0_67] : memref<4x32x128xf32, #tpu.memory_space<vmem>>, vector<1x32x128xf32>
    %200 = vector.shape_cast %199 : vector<1x32x128xf32> to vector<32x128xf32>
    %201 = vector.shape_cast %198 : vector<32x128xf32> to vector<1x32x128xf32>
    tpu.vector_store %arg4[%c2_65, %c0_66, %c0_67], %201 {strides = array<i32>} : memref<4x32x128xf32, #tpu.memory_space<vmem>>, vector<1x32x128xf32>,
    %c3 = arith.constant 3 : index
    %c0_68 = arith.constant 0 : index
    %c0_69 = arith.constant 0 : index
    %202 = vector.load %arg1[%c3, %c0_68, %c0_69] : memref<4x32x128xf32, #tpu.memory_space<vmem>>, vector<1x32x128xf32>
    %203 = vector.shape_cast %202 : vector<1x32x128xf32> to vector<32x128xf32>
    %cst_70 = arith.constant dense<0.000000e+00> : vector<96x128xf32>
    %204 = tpu.matmul %0, %203, %cst_70 {dimension_numbers = #tpu.dot_dimension_numbers<[1], [0], [0], [1], [0, 0, 1, 1], [], []>} : vector<96x32xf32>, vector<32x128xf32>, vector<96x128xf32> -> vector<96x128xf32>
    %205 = vector.extract_strided_slice %204 {offsets = [0, 0], sizes = [32, 128], strides = [1, 1]} : vector<96x128xf32> to vector<32x128xf32>
    %c1_i32_71 = arith.constant 1 : i32
    %206 = tpu.dynamic_rotate %205 by %c1_i32_71 dim 1 : vector<32x128xf32>, i32 -> vector<32x128xf32>
    %cst_72 = arith.constant 0.000000e+00 : f32
    %207 = vector.shape_cast %4 : vector<1x128xi1> to vector<1x128xi1>
    %208 = vector.broadcast %207 : vector<1x128xi1> to vector<32x128xi1>
    %209 = vector.broadcast %cst_72 : f32 to vector<32x128xf32>
    %210 = arith.select %208, %209, %206 : vector<32x128xi1>, vector<32x128xf32>
    %211 = vector.extract_strided_slice %204 {offsets = [64, 0], sizes = [32, 128], strides = [1, 1]} : vector<96x128xf32> to vector<32x128xf32>
    %c127_i32_73 = arith.constant 127 : i32
    %212 = tpu.dynamic_rotate %211 by %c127_i32_73 dim 1 : vector<32x128xf32>, i32 -> vector<32x128xf32>
    %cst_74 = arith.constant 0.000000e+00 : f32
    %213 = vector.shape_cast %6 : vector<1x128xi1> to vector<1x128xi1>
    %214 = vector.broadcast %213 : vector<1x128xi1> to vector<32x128xi1>
    %215 = vector.broadcast %cst_74 : f32 to vector<32x128xf32>
    %216 = arith.select %214, %215, %212 : vector<32x128xi1>, vector<32x128xf32>
    %217 = vector.extract_strided_slice %204 {offsets = [32, 0], sizes = [32, 128], strides = [1, 1]} : vector<96x128xf32> to vector<32x128xf32>
    %218 = arith.addf %210, %217 : vector<32x128xf32>
    %219 = arith.addf %218, %216 : vector<32x128xf32>
    %220 = vector.broadcast %1 : vector<32x1xf32> to vector<32x128xf32>
    %221 = arith.addf %219, %220 : vector<32x128xf32>
    %cst_75 = arith.constant 0.000000e+00 : f32
    %222 = vector.broadcast %cst_75 : f32 to vector<32x128xf32>
    %223 = arith.maximumf %221, %222 : vector<32x128xf32>
    %cst_76 = arith.constant dense<0.000000e+00> : vector<96x128xf32>
    %224 = tpu.matmul %0, %223, %cst_76 {dimension_numbers = #tpu.dot_dimension_numbers<[1], [0], [0], [1], [0, 0, 1, 1], [], []>} : vector<96x32xf32>, vector<32x128xf32>, vector<96x128xf32> -> vector<96x128xf32>
    %225 = vector.extract_strided_slice %224 {offsets = [0, 0], sizes = [32, 128], strides = [1, 1]} : vector<96x128xf32> to vector<32x128xf32>
    %c1_i32_77 = arith.constant 1 : i32
    %226 = tpu.dynamic_rotate %225 by %c1_i32_77 dim 1 : vector<32x128xf32>, i32 -> vector<32x128xf32>
    %cst_78 = arith.constant 0.000000e+00 : f32
    %227 = vector.shape_cast %4 : vector<1x128xi1> to vector<1x128xi1>
    %228 = vector.broadcast %227 : vector<1x128xi1> to vector<32x128xi1>
    %229 = vector.broadcast %cst_78 : f32 to vector<32x128xf32>
    %230 = arith.select %228, %229, %226 : vector<32x128xi1>, vector<32x128xf32>
    %231 = vector.extract_strided_slice %224 {offsets = [64, 0], sizes = [32, 128], strides = [1, 1]} : vector<96x128xf32> to vector<32x128xf32>
    %c127_i32_79 = arith.constant 127 : i32
    %232 = tpu.dynamic_rotate %231 by %c127_i32_79 dim 1 : vector<32x128xf32>, i32 -> vector<32x128xf32>
    %cst_80 = arith.constant 0.000000e+00 : f32
    %233 = vector.shape_cast %6 : vector<1x128xi1> to vector<1x128xi1>
    %234 = vector.broadcast %233 : vector<1x128xi1> to vector<32x128xi1>
    %235 = vector.broadcast %cst_80 : f32 to vector<32x128xf32>
    %236 = arith.select %234, %235, %232 : vector<32x128xi1>, vector<32x128xf32>
    %237 = vector.extract_strided_slice %224 {offsets = [32, 0], sizes = [32, 128], strides = [1, 1]} : vector<96x128xf32> to vector<32x128xf32>
    %238 = arith.addf %230, %237 : vector<32x128xf32>
    %239 = arith.addf %238, %236 : vector<32x128xf32>
    %240 = vector.broadcast %1 : vector<32x1xf32> to vector<32x128xf32>
    %241 = arith.addf %239, %240 : vector<32x128xf32>
    %242 = arith.addf %241, %203 : vector<32x128xf32>
    %cst_81 = arith.constant 0.000000e+00 : f32
    %243 = vector.broadcast %cst_81 : f32 to vector<32x128xf32>
    %244 = arith.maximumf %242, %243 : vector<32x128xf32>
    %245 = vector.shape_cast %244 : vector<32x128xf32> to vector<1x32x128xf32>
    %cst_82 = arith.constant dense<0.000000e+00> : vector<1xf32>
    %246 = vector.multi_reduction <add>, %245, %cst_82 [1, 2] : vector<1x32x128xf32> to vector<1xf32>
    %247 = vector.shape_cast %246 : vector<1xf32> to vector<1x1x1xf32>
    %248 = vector.extract %247[0, 0, 0] : f32 from vector<1x1x1xf32>
    %249 = arith.mulf %244, %244 : vector<32x128xf32>
    %250 = vector.shape_cast %249 : vector<32x128xf32> to vector<1x32x128xf32>
    %cst_83 = arith.constant dense<0.000000e+00> : vector<1xf32>
    %251 = vector.multi_reduction <add>, %250, %cst_83 [1, 2] : vector<1x32x128xf32> to vector<1xf32>
    %252 = vector.shape_cast %251 : vector<1xf32> to vector<1x1x1xf32>
    %253 = vector.extract %252[0, 0, 0] : f32 from vector<1x1x1xf32>
    %cst_84 = arith.constant 2.44140625E-4 : f32
    %254 = arith.mulf %248, %cst_84 : f32
    %cst_85 = arith.constant 2.44140625E-4 : f32
    %255 = arith.mulf %253, %cst_85 : f32
    %256 = arith.mulf %254, %254 : f32
    %257 = arith.subf %255, %256 : f32
    %258 = vector.broadcast %254 : f32 to vector<32x128xf32>
    %259 = arith.subf %244, %258 : vector<32x128xf32>
    %cst_86 = arith.constant 9.99999974E-6 : f32
    %260 = arith.addf %257, %cst_86 : f32
    %261 = math.rsqrt %260 : f32
    %262 = vector.broadcast %261 : f32 to vector<32x128xf32>
    %263 = arith.mulf %259, %262 : vector<32x128xf32>
    %c3_87 = arith.constant 3 : index
    %c0_88 = arith.constant 0 : index
    %c0_89 = arith.constant 0 : index
    %264 = vector.load %arg4[%c3_87, %c0_88, %c0_89] : memref<4x32x128xf32, #tpu.memory_space<vmem>>, vector<1x32x128xf32>
    %265 = vector.shape_cast %264 : vector<1x32x128xf32> to vector<32x128xf32>
    %266 = vector.shape_cast %263 : vector<32x128xf32> to vector<1x32x128xf32>
    tpu.vector_store %arg4[%c3_87, %c0_88, %c0_89], %266 {strides = array<i32>} : memref<4x32x128xf32, #tpu.memory_space<vmem>>, vector<1x32x128xf32>,
    return
  }
  func.func @transform_0(%arg0: i32) -> (i32, i32, i32) {
    %c0_i32 = arith.constant 0 : i32
    %c0_i32_0 = arith.constant 0 : i32
    %c0_i32_1 = arith.constant 0 : i32
    return %arg0, %c0_i32, %c0_i32_0 : i32, i32, i32
  }
  func.func @transform_1(%arg0: i32) -> (i32, i32) {
    %c0_i32 = arith.constant 0 : i32
    %c0_i32_0 = arith.constant 0 : i32
    %c0_i32_1 = arith.constant 0 : i32
    return %c0_i32, %c0_i32_0 : i32, i32
  }
  func.func @transform_2(%arg0: i32) -> (i32, i32) {
    %c0_i32 = arith.constant 0 : i32
    %c0_i32_0 = arith.constant 0 : i32
    %c0_i32_1 = arith.constant 0 : i32
    return %c0_i32, %c0_i32_0 : i32, i32
  }
  func.func @transform_3(%arg0: i32) -> (i32, i32, i32) {
    %c0_i32 = arith.constant 0 : i32
    %c0_i32_0 = arith.constant 0 : i32
    %c0_i32_1 = arith.constant 0 : i32
    return %arg0, %c0_i32, %c0_i32_0 : i32, i32, i32
  }
}

</mosaic_0001>

<llo_original>
// kernel: tpu_custom_call.1
$region0: #{tpu_custom_call.1}
  #allocation0 [shape = 'u32[]', space=smem, size = 0x4, offset = 0x4, fixed_abs, tag = 'smem constant byte address 0x4 - core index']
  #allocation1 [shape = 'u32[144,128]{1,0:T(1,128)}', space=vmem, size = 0x12000, scoped, tag = 'internal scratch']
  %s0 = inlined_call_operand.vmem [shape: f32[4,32,128], index: 0, kind: input, shape index: {}]
  %s1 = inlined_call_operand.vmem [shape: f32[96,32], index: 1, kind: input, shape index: {}]
  %s2 = inlined_call_operand.vmem [shape: f32[32,1], index: 2, kind: input, shape index: {}]
  %s3 = inlined_call_operand.hbm [shape: f32[4,32,128], index: 3, kind: output, shape index: {}]
  %s4 = sld [smem:[#allocation0]]
  $region22: #{tpu_custom_call.1} parent=0
    _
  %s6 = ssub.s32 1, %s4
  %s7 = scalar_select 0, %s6, %s4
  $region1: #{tpu_custom_call.1} parent=0
    #allocation2 [shape = 'u8[65536]{0}', space=vmem, size = 0x10000, scoped, tag = 'output window, operand 0, single buffered']
    #allocation3 [shape = 's32[1]{0}', space=sflag, size = 0x4, scoped, tag = 'scoped memory for tpu_custom_call.1']
    %8 = vsyncpa [#allocation3], 0
    // Predicated region
    $region2: #{tpu_custom_call.1} parent=1 // pred_check
      _
    $region3: #{tpu_custom_call.1} parent=1 // pred_check_branch
      %10 = sbr.rel (0) target = $region5
    $region4: #{tpu_custom_call.1} parent=1 // pred_region
      _
    $region5: #{tpu_custom_call.1} parent=1 // pred_fallthru
      _
    // Predicated region
    $region6: #{tpu_custom_call.1} parent=1 // pred_check
      _
    $region7: #{tpu_custom_call.1} parent=1 // pred_check_branch
      %12 = sbr.rel (0) target = $region9
    $region8: #{tpu_custom_call.1} parent=1 // pred_region
      _
    $region9: #{tpu_custom_call.1} parent=1 // pred_fallthru
      _
    // Predicated region
    $region10: #{tpu_custom_call.1} parent=1 // pred_check
      _
    $region11: #{tpu_custom_call.1} parent=1 // pred_check_branch
      %14 = sbr.rel (0) target = $region13
    $region12: #{tpu_custom_call.1} parent=1 // pred_region
      _
    $region13: #{tpu_custom_call.1} parent=1 // pred_fallthru
      _
    %v15 = vld [vmem:[%s1] sm:$0xff]
    %v16 = vld [vmem:[%s1 + $0x8] sm:$0xff]
    %v17 = vld [vmem:[%s1 + $0x10] sm:$0xff]
    %v18 = vld [vmem:[%s1 + $0x18] sm:$0xff]
    %v19 = vld [vmem:[%s1 + $0x20] sm:$0xff]
    %v20 = vld [vmem:[%s1 + $0x28] sm:$0xff]
    %v21 = vld [vmem:[%s1 + $0x30] sm:$0xff]
    %v22 = vld [vmem:[%s1 + $0x38] sm:$0xff]
    %v23 = vld [vmem:[%s1 + $0x40] sm:$0xff]
    %v24 = vld [vmem:[%s1 + $0x48] sm:$0xff]
    %v25 = vld [vmem:[%s1 + $0x50] sm:$0xff]
    %v26 = vld [vmem:[%s1 + $0x58] sm:$0xff]
    %v27 = vld [vmem:[%s2] sm:$0xff]
    %v28 = vld [vmem:[%s2 + $0x8] sm:$0xff]
    %v29 = vld [vmem:[%s2 + $0x10] sm:$0xff]
    %v30 = vld [vmem:[%s2 + $0x18] sm:$0xff]
    %v31 = vlaneseq
    %v32 = vand.u32 %v31, 127
    %vm33 = vcmp.eq.s32.totalorder %v32, 0
    %vm34 = vcmp.eq.s32.totalorder %v32, 127
    %v35 = vld [vmem:[%s0] sm:$0xff]
    %v36 = vld [vmem:[%s0 + $0x8] sm:$0xff]
    %v37 = vld [vmem:[%s0 + $0x10] sm:$0xff]
    %v38 = vld [vmem:[%s0 + $0x18] sm:$0xff]
    %vm39 = vcmask 261120
    %v41 = vsel %vm39, %v15, 0
    %v44 = vsel %vm39, %v16, 0
    %v47 = vsel %vm39, %v17, 0
    %v50 = vsel %vm39, %v18, 0
    %v53 = vsel %vm39, %v19, 0
    %v56 = vsel %vm39, %v20, 0
    %v59 = vsel %vm39, %v21, 0
    %v62 = vsel %vm39, %v22, 0
    %v65 = vsel %vm39, %v23, 0
    %v68 = vsel %vm39, %v24, 0
    %v71 = vsel %vm39, %v25, 0
    %v74 = vsel %vm39, %v26, 0
    %76 = vmatprep.subr.mxu0 0.0
    %77 = vmatpush1.msra.mxu0 %v35
    %78 = vmatprep.subr.mxu0 0.0
    %79 = vmatpush1.msra.mxu0 %v36
    %80 = vmatprep.subr.mxu0 0.0
    %81 = vmatpush1.msra.mxu0 %v37
    %82 = vmatprep.subr.mxu0 0.0
    %83 = vmatpush1.msra.mxu0 %v38
    %84 = vmatprep.subr.mxu0 0.0
    %85 = vmatpush1.msra.mxu0 0.0
    %86 = vmatprep.subr.mxu0 0.0
    %87 = vmatpush1.msra.mxu0 0.0
    %88 = vmatprep.subr.mxu0 0.0
    %89 = vmatpush1.msra.mxu0 0.0
    %90 = vmatprep.subr.mxu0 0.0
    %91 = vmatpush1.msra.mxu0 0.0
    %92 = vmatprep.subr.mxu0 0.0
    %93 = vmatpush1.msra.mxu0 0.0
    %94 = vmatprep.subr.mxu0 0.0
    %95 = vmatpush1.msra.mxu0 0.0
    %96 = vmatprep.subr.mxu0 0.0
    %97 = vmatpush1.msra.mxu0 0.0
    %98 = vmatprep.subr.mxu0 0.0
    %99 = vmatpush1.msra.mxu0 0.0
    %100 = vmatprep.subr.mxu0 0.0
    %101 = vmatpush1.msra.mxu0 0.0
    %102 = vmatprep.subr.mxu0 0.0
    %103 = vmatpush1.msra.mxu0 0.0
    %104 = vmatprep.subr.mxu0 0.0
    %105 = vmatpush1.msra.mxu0 0.0
    %106 = vmatprep.subr.mxu0 0.0
    %107 = vmatpush1.msra.mxu0 0.0
    %108 = vmatprep.subr.mxu0 0.0
    %109 = vmatpush1.msra.mxu0 0.0
    %110 = vmatprep.subr.mxu0 0.0
    %111 = vmatpush1.msra.mxu0 0.0
    %112 = vmatprep.subr.mxu0 0.0
    %113 = vmatpush1.msra.mxu0 0.0
    %114 = vmatprep.subr.mxu0 0.0
    %115 = vmatpush1.msra.mxu0 0.0
    %116 = vmatprep.subr.mxu0 0.0
    %117 = vmatpush1.msra.mxu0 0.0
    %118 = vmatprep.subr.mxu0 0.0
    %119 = vmatpush1.msra.mxu0 0.0
    %120 = vmatprep.subr.mxu0 0.0
    %121 = vmatpush1.msra.mxu0 0.0
    %122 = vmatprep.subr.mxu0 0.0
    %123 = vmatpush1.msra.mxu0 0.0
    %124 = vmatprep.subr.mxu0 0.0
    %125 = vmatpush1.msra.mxu0 0.0
    %126 = vmatprep.subr.mxu0 0.0
    %127 = vmatpush1.msra.mxu0 0.0
    %128 = vmatprep.subr.mxu0 0.0
    %129 = vmatpush1.msra.mxu0 0.0
    %130 = vmatprep.subr.mxu0 0.0
    %131 = vmatpush1.msra.mxu0 0.0
    %132 = vmatprep.subr.mxu0 0.0
    %133 = vmatpush1.msra.mxu0 0.0
    %134 = vmatprep.subr.mxu0 0.0
    %135 = vmatpush1.msra.mxu0 0.0
    %136 = vmatprep.subr.mxu0 0.0
    %137 = vmatpush1.msra.mxu0 0.0
    %138 = vmatprep.subr.mxu0 0.0
    %139 = vmatpush1.msra.mxu0 0.0
    %140 = vmatprep.mubr.f32.mxu0 0.0
    %141 = vmatmul.mubr.f32.gmra.mrb[0].mxu0 %v41
    %v142 = vpop.f32.mrb[0].mxu0
    %v143 = vadd.f32 0.0, %v142
    %v144 = vpop.f32.mrb[0].mxu0
    %145 = vmatprep.mubr.f32.mxu0 0.0
    %146 = vmatmul.mubr.f32.gmra.mrb[0].mxu0 %v44
    %v147 = vpop.f32.mrb[0].mxu0
    %v148 = vadd.f32 0.0, %v147
    %v149 = vpop.f32.mrb[0].mxu0
    %150 = vmatprep.mubr.f32.mxu0 0.0
    %151 = vmatmul.mubr.f32.gmra.mrb[0].mxu0 %v47
    %v152 = vpop.f32.mrb[0].mxu0
    %v153 = vadd.f32 0.0, %v152
    %v154 = vpop.f32.mrb[0].mxu0
    %155 = vmatprep.mubr.f32.mxu0 0.0
    %156 = vmatmul.mubr.f32.gmra.mrb[0].mxu0 %v50
    %v157 = vpop.f32.mrb[0].mxu0
    %v158 = vadd.f32 0.0, %v157
    %v159 = vpop.f32.mrb[0].mxu0
    %160 = vmatprep.mubr.f32.mxu0 0.0
    %161 = vmatmul.mubr.f32.gmra.mrb[0].mxu0 %v53
    %v162 = vpop.f32.mrb[0].mxu0
    %v163 = vadd.f32 0.0, %v162
    %v164 = vpop.f32.mrb[0].mxu0
    %165 = vmatprep.mubr.f32.mxu0 0.0
    %166 = vmatmul.mubr.f32.gmra.mrb[0].mxu0 %v56
    %v167 = vpop.f32.mrb[0].mxu0
    %v168 = vadd.f32 0.0, %v167
    %v169 = vpop.f32.mrb[0].mxu0
    %170 = vmatprep.mubr.f32.mxu0 0.0
    %171 = vmatmul.mubr.f32.gmra.mrb[0].mxu0 %v59
    %v172 = vpop.f32.mrb[0].mxu0
    %v173 = vadd.f32 0.0, %v172
    %v174 = vpop.f32.mrb[0].mxu0
    %175 = vmatprep.mubr.f32.mxu0 0.0
    %176 = vmatmul.mubr.f32.gmra.mrb[0].mxu0 %v62
    %v177 = vpop.f32.mrb[0].mxu0
    %v178 = vadd.f32 0.0, %v177
    %v179 = vpop.f32.mrb[0].mxu0
    %180 = vmatprep.mubr.f32.mxu0 0.0
    %181 = vmatmul.mubr.f32.gmra.mrb[0].mxu0 %v65
    %v182 = vpop.f32.mrb[0].mxu0
    %v183 = vadd.f32 0.0, %v182
    %v184 = vpop.f32.mrb[0].mxu0
    %185 = vmatprep.mubr.f32.mxu0 0.0
    %186 = vmatmul.mubr.f32.gmra.mrb[0].mxu0 %v68
    %v187 = vpop.f32.mrb[0].mxu0
    %v188 = vadd.f32 0.0, %v187
    %v189 = vpop.f32.mrb[0].mxu0
    %190 = vmatprep.mubr.f32.mxu0 0.0
    %191 = vmatmul.mubr.f32.gmra.mrb[0].mxu0 %v71
    %v192 = vpop.f32.mrb[0].mxu0
    %v193 = vadd.f32 0.0, %v192
    %v194 = vpop.f32.mrb[0].mxu0
    %195 = vmatprep.mubr.f32.mxu0 0.0
    %196 = vmatmul.mubr.f32.gmra.mrb[0].mxu0 %v74
    %v197 = vpop.f32.mrb[0].mxu0
    %v198 = vadd.f32 0.0, %v197
    %v199 = vpop.f32.mrb[0].mxu0
    %200 = vdwg.mxu0
    %201 = vrot.lane.b32.xlu0 %v143, 1
    %v202 = vpop.permute.xlu0 %201
    %203 = vrot.lane.b32.xlu0 %v148, 1
    %v204 = vpop.permute.xlu0 %203
    %205 = vrot.lane.b32.xlu0 %v153, 1
    %v206 = vpop.permute.xlu0 %205
    %207 = vrot.lane.b32.xlu0 %v158, 1
    %v208 = vpop.permute.xlu0 %207
    %v209 = vsel %vm33, 1, 0
    %vm210 = vcmp.eq.s32.totalorder %v209, 1
    %v211 = vsel %vm210, 0.0, %v202
    %v212 = vsel %vm210, 0.0, %v204
    %v213 = vsel %vm210, 0.0, %v206
    %v214 = vsel %vm210, 0.0, %v208
    %215 = vrot.lane.b32.xlu0 %v183, 127
    %v216 = vpop.permute.xlu0 %215
    %217 = vrot.lane.b32.xlu0 %v188, 127
    %v218 = vpop.permute.xlu0 %217
    %219 = vrot.lane.b32.xlu0 %v193, 127
    %v220 = vpop.permute.xlu0 %219
    %221 = vrot.lane.b32.xlu0 %v198, 127
    %v222 = vpop.permute.xlu0 %221
    %v223 = vsel %vm34, 1, 0
    %vm224 = vcmp.eq.s32.totalorder %v223, 1
    %v225 = vsel %vm224, 0.0, %v216
    %v226 = vsel %vm224, 0.0, %v218
    %v227 = vsel %vm224, 0.0, %v220
    %v228 = vsel %vm224, 0.0, %v222
    %v229 = vadd.f32 %v211, %v163
    %v230 = vadd.f32 %v212, %v168
    %v231 = vadd.f32 %v213, %v173
    %v232 = vadd.f32 %v214, %v178
    %v233 = vadd.f32 %v229, %v225
    %v234 = vadd.f32 %v230, %v226
    %v235 = vadd.f32 %v231, %v227
    %v236 = vadd.f32 %v232, %v228
    %238 = vset.pattern.permute.xlu0 0
    %239 = vperm.xlu0 %238, %v27
    %v240 = vpop.permute.xlu0 %239
    %243 = vset.pattern.permute.xlu0 0
    %244 = vperm.xlu0 %243, %v28
    %v245 = vpop.permute.xlu0 %244
    %248 = vset.pattern.permute.xlu0 0
    %249 = vperm.xlu0 %248, %v29
    %v250 = vpop.permute.xlu0 %249
    %253 = vset.pattern.permute.xlu0 0
    %254 = vperm.xlu0 %253, %v30
    %v255 = vpop.permute.xlu0 %254
    %v257 = vadd.f32 %v233, %v240
    %v258 = vadd.f32 %v234, %v245
    %v259 = vadd.f32 %v235, %v250
    %v260 = vadd.f32 %v236, %v255
    %v261 = vmax.f32 %v257, 0.0
    %v262 = vmax.f32 %v258, 0.0
    %v263 = vmax.f32 %v259, 0.0
    %v264 = vmax.f32 %v260, 0.0
    %265 = vmatprep.subr.mxu0 0.0
    %266 = vmatpush1.msra.mxu0 %v261
    %267 = vmatprep.subr.mxu0 0.0
    %268 = vmatpush1.msra.mxu0 %v262
    %269 = vmatprep.subr.mxu0 0.0
    %270 = vmatpush1.msra.mxu0 %v263
    %271 = vmatprep.subr.mxu0 0.0
    %272 = vmatpush1.msra.mxu0 %v264
    %273 = vmatprep.subr.mxu0 0.0
    %274 = vmatpush1.msra.mxu0 0.0
    %275 = vmatprep.subr.mxu0 0.0
    %276 = vmatpush1.msra.mxu0 0.0
    %277 = vmatprep.subr.mxu0 0.0
    %278 = vmatpush1.msra.mxu0 0.0
    %279 = vmatprep.subr.mxu0 0.0
    %280 = vmatpush1.msra.mxu0 0.0
    %281 = vmatprep.subr.mxu0 0.0
    %282 = vmatpush1.msra.mxu0 0.0
    %283 = vmatprep.subr.mxu0 0.0
    %284 = vmatpush1.msra.mxu0 0.0
    %285 = vmatprep.subr.mxu0 0.0
    %286 = vmatpush1.msra.mxu0 0.0
    %287 = vmatprep.subr.mxu0 0.0
    %288 = vmatpush1.msra.mxu0 0.0
    %289 = vmatprep.subr.mxu0 0.0
    %290 = vmatpush1.msra.mxu0 0.0
    %291 = vmatprep.subr.mxu0 0.0
    %292 = vmatpush1.msra.mxu0 0.0
    %293 = vmatprep.subr.mxu0 0.0
    %294 = vmatpush1.msra.mxu0 0.0
    %295 = vmatprep.subr.mxu0 0.0
    %296 = vmatpush1.msra.mxu0 0.0
    %297 = vmatprep.subr.mxu0 0.0
    %298 = vmatpush1.msra.mxu0 0.0
    %299 = vmatprep.subr.mxu0 0.0
    %300 = vmatpush1.msra.mxu0 0.0
    %301 = vmatprep.subr.mxu0 0.0
    %302 = vmatpush1.msra.mxu0 0.0
    %303 = vmatprep.subr.mxu0 0.0
    %304 = vmatpush1.msra.mxu0 0.0
    %305 = vmatprep.subr.mxu0 0.0
    %306 = vmatpush1.msra.mxu0 0.0
    %307 = vmatprep.subr.mxu0 0.0
    %308 = vmatpush1.msra.mxu0 0.0
    %309 = vmatprep.subr.mxu0 0.0
    %310 = vmatpush1.msra.mxu0 0.0
    %311 = vmatprep.subr.mxu0 0.0
    %312 = vmatpush1.msra.mxu0 0.0
    %313 = vmatprep.subr.mxu0 0.0
    %314 = vmatpush1.msra.mxu0 0.0
    %315 = vmatprep.subr.mxu0 0.0
    %316 = vmatpush1.msra.mxu0 0.0
    %317 = vmatprep.subr.mxu0 0.0
    %318 = vmatpush1.msra.mxu0 0.0
    %319 = vmatprep.subr.mxu0 0.0
    %320 = vmatpush1.msra.mxu0 0.0
    %321 = vmatprep.subr.mxu0 0.0
    %322 = vmatpush1.msra.mxu0 0.0
    %323 = vmatprep.subr.mxu0 0.0
    %324 = vmatpush1.msra.mxu0 0.0
    %325 = vmatprep.subr.mxu0 0.0
    %326 = vmatpush1.msra.mxu0 0.0
    %327 = vmatprep.subr.mxu0 0.0
    %328 = vmatpush1.msra.mxu0 0.0
    %329 = vmatprep.mubr.f32.mxu0 0.0
    %330 = vmatmul.mubr.f32.gmra.mrb[0].mxu0 %v41
    %v331 = vpop.f32.mrb[0].mxu0
    %v332 = vadd.f32 0.0, %v331
    %v333 = vpop.f32.mrb[0].mxu0
    %334 = vmatprep.mubr.f32.mxu0 0.0
    %335 = vmatmul.mubr.f32.gmra.mrb[0].mxu0 %v44
    %v336 = vpop.f32.mrb[0].mxu0
    %v337 = vadd.f32 0.0, %v336
    %v338 = vpop.f32.mrb[0].mxu0
    %339 = vmatprep.mubr.f32.mxu0 0.0
    %340 = vmatmul.mubr.f32.gmra.mrb[0].mxu0 %v47
    %v341 = vpop.f32.mrb[0].mxu0
    %v342 = vadd.f32 0.0, %v341
    %v343 = vpop.f32.mrb[0].mxu0
    %344 = vmatprep.mubr.f32.mxu0 0.0
    %345 = vmatmul.mubr.f32.gmra.mrb[0].mxu0 %v50
    %v346 = vpop.f32.mrb[0].mxu0
    %v347 = vadd.f32 0.0, %v346
    %v348 = vpop.f32.mrb[0].mxu0
    %349 = vmatprep.mubr.f32.mxu0 0.0
    %350 = vmatmul.mubr.f32.gmra.mrb[0].mxu0 %v53
    %v351 = vpop.f32.mrb[0].mxu0
    %v352 = vadd.f32 0.0, %v351
    %v353 = vpop.f32.mrb[0].mxu0
    %354 = vmatprep.mubr.f32.mxu0 0.0
    %355 = vmatmul.mubr.f32.gmra.mrb[0].mxu0 %v56
    %v356 = vpop.f32.mrb[0].mxu0
    %v357 = vadd.f32 0.0, %v356
    %v358 = vpop.f32.mrb[0].mxu0
    %359 = vmatprep.mubr.f32.mxu0 0.0
    %360 = vmatmul.mubr.f32.gmra.mrb[0].mxu0 %v59
    %v361 = vpop.f32.mrb[0].mxu0
    %v362 = vadd.f32 0.0, %v361
    %v363 = vpop.f32.mrb[0].mxu0
    %364 = vmatprep.mubr.f32.mxu0 0.0
    %365 = vmatmul.mubr.f32.gmra.mrb[0].mxu0 %v62
    %v366 = vpop.f32.mrb[0].mxu0
    %v367 = vadd.f32 0.0, %v366
    %v368 = vpop.f32.mrb[0].mxu0
    %369 = vmatprep.mubr.f32.mxu0 0.0
    %370 = vmatmul.mubr.f32.gmra.mrb[0].mxu0 %v65
    %v371 = vpop.f32.mrb[0].mxu0
    %v372 = vadd.f32 0.0, %v371
    %v373 = vpop.f32.mrb[0].mxu0
    %374 = vmatprep.mubr.f32.mxu0 0.0
    %375 = vmatmul.mubr.f32.gmra.mrb[0].mxu0 %v68
    %v376 = vpop.f32.mrb[0].mxu0
    %v377 = vadd.f32 0.0, %v376
    %v378 = vpop.f32.mrb[0].mxu0
    %379 = vmatprep.mubr.f32.mxu0 0.0
    %380 = vmatmul.mubr.f32.gmra.mrb[0].mxu0 %v71
    %v381 = vpop.f32.mrb[0].mxu0
    %v382 = vadd.f32 0.0, %v381
    %v383 = vpop.f32.mrb[0].mxu0
    %384 = vmatprep.mubr.f32.mxu0 0.0
    %385 = vmatmul.mubr.f32.gmra.mrb[0].mxu0 %v74
    %v386 = vpop.f32.mrb[0].mxu0
    %v387 = vadd.f32 0.0, %v386
    %v388 = vpop.f32.mrb[0].mxu0
    %389 = vdwg.mxu0
    %390 = vrot.lane.b32.xlu0 %v332, 1
    %v391 = vpop.permute.xlu0 %390
    %392 = vrot.lane.b32.xlu0 %v337, 1
    %v393 = vpop.permute.xlu0 %392
    %394 = vrot.lane.b32.xlu0 %v342, 1
    %v395 = vpop.permute.xlu0 %394
    %396 = vrot.lane.b32.xlu0 %v347, 1
    %v397 = vpop.permute.xlu0 %396
    %v398 = vsel %vm210, 0.0, %v391
    %v399 = vsel %vm210, 0.0, %v393
    %v400 = vsel %vm210, 0.0, %v395
    %v401 = vsel %vm210, 0.0, %v397
    %402 = vrot.lane.b32.xlu0 %v372, 127
    %v403 = vpop.permute.xlu0 %402
    %404 = vrot.lane.b32.xlu0 %v377, 127
    %v405 = vpop.permute.xlu0 %404
    %406 = vrot.lane.b32.xlu0 %v382, 127
    %v407 = vpop.permute.xlu0 %406
    %408 = vrot.lane.b32.xlu0 %v387, 127
    %v409 = vpop.permute.xlu0 %408
    %v410 = vsel %vm224, 0.0, %v403
    %v411 = vsel %vm224, 0.0, %v405
    %v412 = vsel %vm224, 0.0, %v407
    %v413 = vsel %vm224, 0.0, %v409
    %v414 = vadd.f32 %v398, %v352
    %v415 = vadd.f32 %v399, %v357
    %v416 = vadd.f32 %v400, %v362
    %v417 = vadd.f32 %v401, %v367
    %v418 = vadd.f32 %v414, %v410
    %v419 = vadd.f32 %v415, %v411
    %v420 = vadd.f32 %v416, %v412
    %v421 = vadd.f32 %v417, %v413
    %v422 = vadd.f32 %v418, %v240
    %v423 = vadd.f32 %v419, %v245
    %v424 = vadd.f32 %v420, %v250
    %v425 = vadd.f32 %v421, %v255
    %v426 = vadd.f32 %v422, %v35
    %v427 = vadd.f32 %v423, %v36
    %v428 = vadd.f32 %v424, %v37
    %v429 = vadd.f32 %v425, %v38
    %v430 = vmax.f32 %v426, 0.0
    %v431 = vmax.f32 %v427, 0.0
    %v432 = vmax.f32 %v428, 0.0
    %v433 = vmax.f32 %v429, 0.0
    %v434 = vadd.f32 %v430, %v431
    %v435 = vadd.f32 %v434, %v432
    %v436 = vadd.f32 %v435, %v433
    %437 = vadd.xlane.f32.xlu0 %v436
    %v438 = vpop.xlane.xlu0 %437
    %v439 = vrot.slane %v438, 4
    %v440 = vadd.f32 %v438, %v439
    %v441 = vrot.slane %v440, 2
    %v442 = vadd.f32 %v440, %v441
    %v443 = vrot.slane %v442, 1
    %v444 = vadd.f32 %v442, %v443
    %s445 = vtos %v444
    %v446 = vmul.f32 %v430, %v430
    %v447 = vmul.f32 %v431, %v431
    %v448 = vmul.f32 %v432, %v432
    %v449 = vmul.f32 %v433, %v433
    %v450 = vadd.f32 %v446, %v447
    %v451 = vadd.f32 %v450, %v448
    %v452 = vadd.f32 %v451, %v449
    %453 = vadd.xlane.f32.xlu0 %v452
    %v454 = vpop.xlane.xlu0 %453
    %v455 = vrot.slane %v454, 4
    %v456 = vadd.f32 %v454, %v455
    %v457 = vrot.slane %v456, 2
    %v458 = vadd.f32 %v456, %v457
    %v459 = vrot.slane %v458, 1
    %v460 = vadd.f32 %v458, %v459
    %s461 = vtos %v460
    %s462 = smul.f32 %s445, 0.00024414063
    %s463 = smul.f32 %s461, 0.00024414063
    %s464 = smul.f32 %s462, %s462
    %s465 = ssub.f32 %s463, %s464
    %v466 = vstv %s462
    %v467 = vsub.f32 %v430, %v466
    %v468 = vsub.f32 %v431, %v466
    %v469 = vsub.f32 %v432, %v466
    %v470 = vsub.f32 %v433, %v466
    %s471 = sadd.f32 %s465, 1e-05
    %v472 = vstv %s471
    %v473 = vrsqrt.pop %v472
    %s474 = vtos %v473
    %v475 = vstv %s474
    %v476 = vmul.f32 %v467, %v475
    %v477 = vmul.f32 %v468, %v475
    %v478 = vmul.f32 %v469, %v475
    %v479 = vmul.f32 %v470, %v475
    %480 = vst [vmem:[#allocation2] sm:$0xff] %v476
    %481 = vst [vmem:[#allocation2 + $0x8] sm:$0xff] %v477
    %482 = vst [vmem:[#allocation2 + $0x10] sm:$0xff] %v478
    %483 = vst [vmem:[#allocation2 + $0x18] sm:$0xff] %v479
    %s484 = scalar_lea.vmem %s0, 32
    %v485 = vld [vmem:[%s484] sm:$0xff]
    %v486 = vld [vmem:[%s484 + $0x8] sm:$0xff]
    %v487 = vld [vmem:[%s484 + $0x10] sm:$0xff]
    %v488 = vld [vmem:[%s484 + $0x18] sm:$0xff]
    %489 = vmatprep.subr.mxu0 0.0
    %490 = vmatpush1.msra.mxu0 %v485
    %491 = vmatprep.subr.mxu0 0.0
    %492 = vmatpush1.msra.mxu0 %v486
    %493 = vmatprep.subr.mxu0 0.0
    %494 = vmatpush1.msra.mxu0 %v487
    %495 = vmatprep.subr.mxu0 0.0
    %496 = vmatpush1.msra.mxu0 %v488
    %497 = vmatprep.subr.mxu0 0.0
    %498 = vmatpush1.msra.mxu0 0.0
    %499 = vmatprep.subr.mxu0 0.0
    %500 = vmatpush1.msra.mxu0 0.0
    %501 = vmatprep.subr.mxu0 0.0
    %502 = vmatpush1.msra.mxu0 0.0
    %503 = vmatprep.subr.mxu0 0.0
    %504 = vmatpush1.msra.mxu0 0.0
    %505 = vmatprep.subr.mxu0 0.0
    %506 = vmatpush1.msra.mxu0 0.0
    %507 = vmatprep.subr.mxu0 0.0
    %508 = vmatpush1.msra.mxu0 0.0
    %509 = vmatprep.subr.mxu0 0.0
    %510 = vmatpush1.msra.mxu0 0.0
    %511 = vmatprep.subr.mxu0 0.0
    %512 = vmatpush1.msra.mxu0 0.0
    %513 = vmatprep.subr.mxu0 0.0
    %514 = vmatpush1.msra.mxu0 0.0
    %515 = vmatprep.subr.mxu0 0.0
    %516 = vmatpush1.msra.mxu0 0.0
    %517 = vmatprep.subr.mxu0 0.0
    %518 = vmatpush1.msra.mxu0 0.0
    %519 = vmatprep.subr.mxu0 0.0
    %520 = vmatpush1.msra.mxu0 0.0
    %521 = vmatprep.subr.mxu0 0.0
    %522 = vmatpush1.msra.mxu0 0.0
    %523 = vmatprep.subr.mxu0 0.0
    %524 = vmatpush1.msra.mxu0 0.0
    %525 = vmatprep.subr.mxu0 0.0
    %526 = vmatpush1.msra.mxu0 0.0
    %527 = vmatprep.subr.mxu0 0.0
    %528 = vmatpush1.msra.mxu0 0.0
    %529 = vmatprep.subr.mxu0 0.0
    %530 = vmatpush1.msra.mxu0 0.0
    %531 = vmatprep.subr.mxu0 0.0
    %532 = vmatpush1.msra.mxu0 0.0
    %533 = vmatprep.subr.mxu0 0.0
    %534 = vmatpush1.msra.mxu0 0.0
    %535 = vmatprep.subr.mxu0 0.0
    %536 = vmatpush1.msra.mxu0 0.0
    %537 = vmatprep.subr.mxu0 0.0
    %538 = vmatpush1.msra.mxu0 0.0
    %539 = vmatprep.subr.mxu0 0.0
    %540 = vmatpush1.msra.mxu0 0.0
    %541 = vmatprep.subr.mxu0 0.0
    %542 = vmatpush1.msra.mxu0 0.0
    %543 = vmatprep.subr.mxu0 0.0
    %544 = vmatpush1.msra.mxu0 0.0
    %545 = vmatprep.subr.mxu0 0.0
    %546 = vmatpush1.msra.mxu0 0.0
    %547 = vmatprep.subr.mxu0 0.0
    %548 = vmatpush1.msra.mxu0 0.0
    %549 = vmatprep.subr.mxu0 0.0
    %550 = vmatpush1.msra.mxu0 0.0
    %551 = vmatprep.subr.mxu0 0.0
    %552 = vmatpush1.msra.mxu0 0.0
    %553 = vmatprep.mubr.f32.mxu0 0.0
    %554 = vmatmul.mubr.f32.gmra.mrb[0].mxu0 %v41
    %v555 = vpop.f32.mrb[0].mxu0
    %v556 = vadd.f32 0.0, %v555
    %v557 = vpop.f32.mrb[0].mxu0
    %558 = vmatprep.mubr.f32.mxu0 0.0
    %559 = vmatmul.mubr.f32.gmra.mrb[0].mxu0 %v44
    %v560 = vpop.f32.mrb[0].mxu0
    %v561 = vadd.f32 0.0, %v560
    %v562 = vpop.f32.mrb[0].mxu0
    %563 = vmatprep.mubr.f32.mxu0 0.0
    %564 = vmatmul.mubr.f32.gmra.mrb[0].mxu0 %v47
    %v565 = vpop.f32.mrb[0].mxu0
    %v566 = vadd.f32 0.0, %v565
    %v567 = vpop.f32.mrb[0].mxu0
    %568 = vmatprep.mubr.f32.mxu0 0.0
    %569 = vmatmul.mubr.f32.gmra.mrb[0].mxu0 %v50
    %v570 = vpop.f32.mrb[0].mxu0
    %v571 = vadd.f32 0.0, %v570
    %v572 = vpop.f32.mrb[0].mxu0
    %573 = vmatprep.mubr.f32.mxu0 0.0
    %574 = vmatmul.mubr.f32.gmra.mrb[0].mxu0 %v53
    %v575 = vpop.f32.mrb[0].mxu0
    %v576 = vadd.f32 0.0, %v575
    %v577 = vpop.f32.mrb[0].mxu0
    %578 = vmatprep.mubr.f32.mxu0 0.0
    %579 = vmatmul.mubr.f32.gmra.mrb[0].mxu0 %v56
    %v580 = vpop.f32.mrb[0].mxu0
    %v581 = vadd.f32 0.0, %v580
    %v582 = vpop.f32.mrb[0].mxu0
    %583 = vmatprep.mubr.f32.mxu0 0.0
    %584 = vmatmul.mubr.f32.gmra.mrb[0].mxu0 %v59
    %v585 = vpop.f32.mrb[0].mxu0
    %v586 = vadd.f32 0.0, %v585
    %v587 = vpop.f32.mrb[0].mxu0
    %588 = vmatprep.mubr.f32.mxu0 0.0
    %589 = vmatmul.mubr.f32.gmra.mrb[0].mxu0 %v62
    %v590 = vpop.f32.mrb[0].mxu0
    %v591 = vadd.f32 0.0, %v590
    %v592 = vpop.f32.mrb[0].mxu0
    %593 = vmatprep.mubr.f32.mxu0 0.0
    %594 = vmatmul.mubr.f32.gmra.mrb[0].mxu0 %v65
    %v595 = vpop.f32.mrb[0].mxu0
    %v596 = vadd.f32 0.0, %v595
    %v597 = vpop.f32.mrb[0].mxu0
    %598 = vmatprep.mubr.f32.mxu0 0.0
    %599 = vmatmul.mubr.f32.gmra.mrb[0].mxu0 %v68
    %v600 = vpop.f32.mrb[0].mxu0
    %v601 = vadd.f32 0.0, %v600
    %v602 = vpop.f32.mrb[0].mxu0
    %603 = vmatprep.mubr.f32.mxu0 0.0
    %604 = vmatmul.mubr.f32.gmra.mrb[0].mxu0 %v71
    %v605 = vpop.f32.mrb[0].mxu0
    %v606 = vadd.f32 0.0, %v605
    %v607 = vpop.f32.mrb[0].mxu0
    %608 = vmatprep.mubr.f32.mxu0 0.0
    %609 = vmatmul.mubr.f32.gmra.mrb[0].mxu0 %v74
    %v610 = vpop.f32.mrb[0].mxu0
    %v611 = vadd.f32 0.0, %v610
    %v612 = vpop.f32.mrb[0].mxu0
    %613 = vdwg.mxu0
    %614 = vrot.lane.b32.xlu0 %v556, 1
    %v615 = vpop.permute.xlu0 %614
    %616 = vrot.lane.b32.xlu0 %v561, 1
    %v617 = vpop.permute.xlu0 %616
    %618 = vrot.lane.b32.xlu0 %v566, 1
    %v619 = vpop.permute.xlu0 %618
    %620 = vrot.lane.b32.xlu0 %v571, 1
    %v621 = vpop.permute.xlu0 %620
    %v622 = vsel %vm210, 0.0, %v615
    %v623 = vsel %vm210, 0.0, %v617
    %v624 = vsel %vm210, 0.0, %v619
    %v625 = vsel %vm210, 0.0, %v621
    %626 = vrot.lane.b32.xlu0 %v596, 127
    %v627 = vpop.permute.xlu0 %626
    %628 = vrot.lane.b32.xlu0 %v601, 127
    %v629 = vpop.permute.xlu0 %628
    %630 = vrot.lane.b32.xlu0 %v606, 127
    %v631 = vpop.permute.xlu0 %630
    %632 = vrot.lane.b32.xlu0 %v611, 127
    %v633 = vpop.permute.xlu0 %632
    %v634 = vsel %vm224, 0.0, %v627
    %v635 = vsel %vm224, 0.0, %v629
    %v636 = vsel %vm224, 0.0, %v631
    %v637 = vsel %vm224, 0.0, %v633
    %v638 = vadd.f32 %v622, %v576
    %v639 = vadd.f32 %v623, %v581
    %v640 = vadd.f32 %v624, %v586
    %v641 = vadd.f32 %v625, %v591
    %v642 = vadd.f32 %v638, %v634
    %v643 = vadd.f32 %v639, %v635
    %v644 = vadd.f32 %v640, %v636
    %v645 = vadd.f32 %v641, %v637
    %v646 = vadd.f32 %v642, %v240
    %v647 = vadd.f32 %v643, %v245
    %v648 = vadd.f32 %v644, %v250
    %v649 = vadd.f32 %v645, %v255
    %v650 = vmax.f32 %v646, 0.0
    %v651 = vmax.f32 %v647, 0.0
    %v652 = vmax.f32 %v648, 0.0
    %v653 = vmax.f32 %v649, 0.0
    %654 = vmatprep.subr.mxu0 0.0
    %655 = vmatpush1.msra.mxu0 %v650
    %656 = vmatprep.subr.mxu0 0.0
    %657 = vmatpush1.msra.mxu0 %v651
    %658 = vmatprep.subr.mxu0 0.0
    %659 = vmatpush1.msra.mxu0 %v652
    %660 = vmatprep.subr.mxu0 0.0
    %661 = vmatpush1.msra.mxu0 %v653
    %662 = vmatprep.subr.mxu0 0.0
    %663 = vmatpush1.msra.mxu0 0.0
    %664 = vmatprep.subr.mxu0 0.0
    %665 = vmatpush1.msra.mxu0 0.0
    %666 = vmatprep.subr.mxu0 0.0
    %667 = vmatpush1.msra.mxu0 0.0
    %668 = vmatprep.subr.mxu0 0.0
    %669 = vmatpush1.msra.mxu0 0.0
    %670 = vmatprep.subr.mxu0 0.0
    %671 = vmatpush1.msra.mxu0 0.0
    %672 = vmatprep.subr.mxu0 0.0
    %673 = vmatpush1.msra.mxu0 0.0
    %674 = vmatprep.subr.mxu0 0.0
    %675 = vmatpush1.msra.mxu0 0.0
    %676 = vmatprep.subr.mxu0 0.0
    %677 = vmatpush1.msra.mxu0 0.0
    %678 = vmatprep.subr.mxu0 0.0
    %679 = vmatpush1.msra.mxu0 0.0
    %680 = vmatprep.subr.mxu0 0.0
    %681 = vmatpush1.msra.mxu0 0.0
    %682 = vmatprep.subr.mxu0 0.0
    %683 = vmatpush1.msra.mxu0 0.0
    %684 = vmatprep.subr.mxu0 0.0
    %685 = vmatpush1.msra.mxu0 0.0
    %686 = vmatprep.subr.mxu0 0.0
    %687 = vmatpush1.msra.mxu0 0.0
    %688 = vmatprep.subr.mxu0 0.0
    %689 = vmatpush1.msra.mxu0 0.0
    %690 = vmatprep.subr.mxu0 0.0
    %691 = vmatpush1.msra.mxu0 0.0
    %692 = vmatprep.subr.mxu0 0.0
    %693 = vmatpush1.msra.mxu0 0.0
    %694 = vmatprep.subr.mxu0 0.0
    %695 = vmatpush1.msra.mxu0 0.0
    %696 = vmatprep.subr.mxu0 0.0
    %697 = vmatpush1.msra.mxu0 0.0
    %698 = vmatprep.subr.mxu0 0.0
    %699 = vmatpush1.msra.mxu0 0.0
    %700 = vmatprep.subr.mxu0 0.0
    %701 = vmatpush1.msra.mxu0 0.0
    %702 = vmatprep.subr.mxu0 0.0
    %703 = vmatpush1.msra.mxu0 0.0
    %704 = vmatprep.subr.mxu0 0.0
    %705 = vmatpush1.msra.mxu0 0.0
    %706 = vmatprep.subr.mxu0 0.0
    %707 = vmatpush1.msra.mxu0 0.0
    %708 = vmatprep.subr.mxu0 0.0
    %709 = vmatpush1.msra.mxu0 0.0
    %710 = vmatprep.subr.mxu0 0.0
    %711 = vmatpush1.msra.mxu0 0.0
    %712 = vmatprep.subr.mxu0 0.0
    %713 = vmatpush1.msra.mxu0 0.0
    %714 = vmatprep.subr.mxu0 0.0
    %715 = vmatpush1.msra.mxu0 0.0
    %716 = vmatprep.subr.mxu0 0.0
    %717 = vmatpush1.msra.mxu0 0.0
    %718 = vmatprep.mubr.f32.mxu0 0.0
    %719 = vmatmul.mubr.f32.gmra.mrb[0].mxu0 %v41
    %v720 = vpop.f32.mrb[0].mxu0
    %v721 = vadd.f32 0.0, %v720
    %v722 = vpop.f32.mrb[0].mxu0
    %723 = vmatprep.mubr.f32.mxu0 0.0
    %724 = vmatmul.mubr.f32.gmra.mrb[0].mxu0 %v44
    %v725 = vpop.f32.mrb[0].mxu0
    %v726 = vadd.f32 0.0, %v725
    %v727 = vpop.f32.mrb[0].mxu0
    %728 = vmatprep.mubr.f32.mxu0 0.0
    %729 = vmatmul.mubr.f32.gmra.mrb[0].mxu0 %v47
    %v730 = vpop.f32.mrb[0].mxu0
    %v731 = vadd.f32 0.0, %v730
    %v732 = vpop.f32.mrb[0].mxu0
    %733 = vmatprep.mubr.f32.mxu0 0.0
    %734 = vmatmul.mubr.f32.gmra.mrb[0].mxu0 %v50
    %v735 = vpop.f32.mrb[0].mxu0
    %v736 = vadd.f32 0.0, %v735
    %v737 = vpop.f32.mrb[0].mxu0
    %738 = vmatprep.mubr.f32.mxu0 0.0
    %739 = vmatmul.mubr.f32.gmra.mrb[0].mxu0 %v53
    %v740 = vpop.f32.mrb[0].mxu0
    %v741 = vadd.f32 0.0, %v740
    %v742 = vpop.f32.mrb[0].mxu0
    %743 = vmatprep.mubr.f32.mxu0 0.0
    %744 = vmatmul.mubr.f32.gmra.mrb[0].mxu0 %v56
    %v745 = vpop.f32.mrb[0].mxu0
    %v746 = vadd.f32 0.0, %v745
    %v747 = vpop.f32.mrb[0].mxu0
    %748 = vmatprep.mubr.f32.mxu0 0.0
    %749 = vmatmul.mubr.f32.gmra.mrb[0].mxu0 %v59
    %v750 = vpop.f32.mrb[0].mxu0
    %v751 = vadd.f32 0.0, %v750
    %v752 = vpop.f32.mrb[0].mxu0
    %753 = vmatprep.mubr.f32.mxu0 0.0
    %754 = vmatmul.mubr.f32.gmra.mrb[0].mxu0 %v62
    %v755 = vpop.f32.mrb[0].mxu0
    %v756 = vadd.f32 0.0, %v755
    %v757 = vpop.f32.mrb[0].mxu0
    %758 = vmatprep.mubr.f32.mxu0 0.0
    %759 = vmatmul.mubr.f32.gmra.mrb[0].mxu0 %v65
    %v760 = vpop.f32.mrb[0].mxu0
    %v761 = vadd.f32 0.0, %v760
    %v762 = vpop.f32.mrb[0].mxu0
    %763 = vmatprep.mubr.f32.mxu0 0.0
    %764 = vmatmul.mubr.f32.gmra.mrb[0].mxu0 %v68
    %v765 = vpop.f32.mrb[0].mxu0
    %v766 = vadd.f32 0.0, %v765
    %v767 = vpop.f32.mrb[0].mxu0
    %768 = vmatprep.mubr.f32.mxu0 0.0
    %769 = vmatmul.mubr.f32.gmra.mrb[0].mxu0 %v71
    %v770 = vpop.f32.mrb[0].mxu0
    %v771 = vadd.f32 0.0, %v770
    %v772 = vpop.f32.mrb[0].mxu0
    %773 = vmatprep.mubr.f32.mxu0 0.0
    %774 = vmatmul.mubr.f32.gmra.mrb[0].mxu0 %v74
    %v775 = vpop.f32.mrb[0].mxu0
    %v776 = vadd.f32 0.0, %v775
    %v777 = vpop.f32.mrb[0].mxu0
    %778 = vdwg.mxu0
    %779 = vrot.lane.b32.xlu0 %v721, 1
    %v780 = vpop.permute.xlu0 %779
    %781 = vrot.lane.b32.xlu0 %v726, 1
    %v782 = vpop.permute.xlu0 %781
    %783 = vrot.lane.b32.xlu0 %v731, 1
    %v784 = vpop.permute.xlu0 %783
    %785 = vrot.lane.b32.xlu0 %v736, 1
    %v786 = vpop.permute.xlu0 %785
    %v787 = vsel %vm210, 0.0, %v780
    %v788 = vsel %vm210, 0.0, %v782
    %v789 = vsel %vm210, 0.0, %v784
    %v790 = vsel %vm210, 0.0, %v786
    %791 = vrot.lane.b32.xlu0 %v761, 127
    %v792 = vpop.permute.xlu0 %791
    %793 = vrot.lane.b32.xlu0 %v766, 127
    %v794 = vpop.permute.xlu0 %793
    %795 = vrot.lane.b32.xlu0 %v771, 127
    %v796 = vpop.permute.xlu0 %795
    %797 = vrot.lane.b32.xlu0 %v776, 127
    %v798 = vpop.permute.xlu0 %797
    %v799 = vsel %vm224, 0.0, %v792
    %v800 = vsel %vm224, 0.0, %v794
    %v801 = vsel %vm224, 0.0, %v796
    %v802 = vsel %vm224, 0.0, %v798
    %v803 = vadd.f32 %v787, %v741
    %v804 = vadd.f32 %v788, %v746
    %v805 = vadd.f32 %v789, %v751
    %v806 = vadd.f32 %v790, %v756
    %v807 = vadd.f32 %v803, %v799
    %v808 = vadd.f32 %v804, %v800
    %v809 = vadd.f32 %v805, %v801
    %v810 = vadd.f32 %v806, %v802
    %v811 = vadd.f32 %v807, %v240
    %v812 = vadd.f32 %v808, %v245
    %v813 = vadd.f32 %v809, %v250
    %v814 = vadd.f32 %v810, %v255
    %v815 = vadd.f32 %v811, %v485
    %v816 = vadd.f32 %v812, %v486
    %v817 = vadd.f32 %v813, %v487
    %v818 = vadd.f32 %v814, %v488
    %v819 = vmax.f32 %v815, 0.0
    %v820 = vmax.f32 %v816, 0.0
    %v821 = vmax.f32 %v817, 0.0
    %v822 = vmax.f32 %v818, 0.0
    %v823 = vadd.f32 %v819, %v820
    %v824 = vadd.f32 %v823, %v821
    %v825 = vadd.f32 %v824, %v822
    %826 = vadd.xlane.f32.xlu0 %v825
    %v827 = vpop.xlane.xlu0 %826
    %v828 = vrot.slane %v827, 4
    %v829 = vadd.f32 %v827, %v828
    %v830 = vrot.slane %v829, 2
    %v831 = vadd.f32 %v829, %v830
    %v832 = vrot.slane %v831, 1
    %v833 = vadd.f32 %v831, %v832
    %s834 = vtos %v833
    %v835 = vmul.f32 %v819, %v819
    %v836 = vmul.f32 %v820, %v820
    %v837 = vmul.f32 %v821, %v821
    %v838 = vmul.f32 %v822, %v822
    %v839 = vadd.f32 %v835, %v836
    %v840 = vadd.f32 %v839, %v837
    %v841 = vadd.f32 %v840, %v838
    %842 = vadd.xlane.f32.xlu0 %v841
    %v843 = vpop.xlane.xlu0 %842
    %v844 = vrot.slane %v843, 4
    %v845 = vadd.f32 %v843, %v844
    %v846 = vrot.slane %v845, 2
    %v847 = vadd.f32 %v845, %v846
    %v848 = vrot.slane %v847, 1
    %v849 = vadd.f32 %v847, %v848
    %s850 = vtos %v849
    %s851 = smul.f32 %s834, 0.00024414063
    %s852 = smul.f32 %s850, 0.00024414063
    %s853 = smul.f32 %s851, %s851
    %s854 = ssub.f32 %s852, %s853
    %v855 = vstv %s851
    %v856 = vsub.f32 %v819, %v855
    %v857 = vsub.f32 %v820, %v855
    %v858 = vsub.f32 %v821, %v855
    %v859 = vsub.f32 %v822, %v855
    %s860 = sadd.f32 %s854, 1e-05
    %v861 = vstv %s860
    %v862 = vrsqrt.pop %v861
    %s863 = vtos %v862
    %v864 = vstv %s863
    %v865 = vmul.f32 %v856, %v864
    %v866 = vmul.f32 %v857, %v864
    %v867 = vmul.f32 %v858, %v864
    %v868 = vmul.f32 %v859, %v864
    %s869 = scalar_lea.vmem [#allocation2], 32
    %870 = vst [vmem:[%s869] sm:$0xff] %v865
    %871 = vst [vmem:[%s869 + $0x8] sm:$0xff] %v866
    %872 = vst [vmem:[%s869 + $0x10] sm:$0xff] %v867
    %873 = vst [vmem:[%s869 + $0x18] sm:$0xff] %v868
    %s874 = scalar_lea.vmem %s0, 64
    %v875 = vld [vmem:[%s874] sm:$0xff]
    %v876 = vld [vmem:[%s874 + $0x8] sm:$0xff]
    %v877 = vld [vmem:[%s874 + $0x10] sm:$0xff]
    %v878 = vld [vmem:[%s874 + $0x18] sm:$0xff]
    %879 = vmatprep.subr.mxu0 0.0
    %880 = vmatpush1.msra.mxu0 %v875
    %881 = vmatprep.subr.mxu0 0.0
    %882 = vmatpush1.msra.mxu0 %v876
    %883 = vmatprep.subr.mxu0 0.0
    %884 = vmatpush1.msra.mxu0 %v877
    %885 = vmatprep.subr.mxu0 0.0
    %886 = vmatpush1.msra.mxu0 %v878
    %887 = vmatprep.subr.mxu0 0.0
    %888 = vmatpush1.msra.mxu0 0.0
    %889 = vmatprep.subr.mxu0 0.0
    %890 = vmatpush1.msra.mxu0 0.0
    %891 = vmatprep.subr.mxu0 0.0
    %892 = vmatpush1.msra.mxu0 0.0
    %893 = vmatprep.subr.mxu0 0.0
    %894 = vmatpush1.msra.mxu0 0.0
    %895 = vmatprep.subr.mxu0 0.0
    %896 = vmatpush1.msra.mxu0 0.0
    %897 = vmatprep.subr.mxu0 0.0
    %898 = vmatpush1.msra.mxu0 0.0
    %899 = vmatprep.subr.mxu0 0.0
    %900 = vmatpush1.msra.mxu0 0.0
    %901 = vmatprep.subr.mxu0 0.0
    %902 = vmatpush1.msra.mxu0 0.0
    %903 = vmatprep.subr.mxu0 0.0
    %904 = vmatpush1.msra.mxu0 0.0
    %905 = vmatprep.subr.mxu0 0.0
    %906 = vmatpush1.msra.mxu0 0.0
    %907 = vmatprep.subr.mxu0 0.0
    %908 = vmatpush1.msra.mxu0 0.0
    %909 = vmatprep.subr.mxu0 0.0
    %910 = vmatpush1.msra.mxu0 0.0
    %911 = vmatprep.subr.mxu0 0.0
    %912 = vmatpush1.msra.mxu0 0.0
    %913 = vmatprep.subr.mxu0 0.0
    %914 = vmatpush1.msra.mxu0 0.0
    %915 = vmatprep.subr.mxu0 0.0
    %916 = vmatpush1.msra.mxu0 0.0
    %917 = vmatprep.subr.mxu0 0.0
    %918 = vmatpush1.msra.mxu0 0.0
    %919 = vmatprep.subr.mxu0 0.0
    %920 = vmatpush1.msra.mxu0 0.0
    %921 = vmatprep.subr.mxu0 0.0
    %922 = vmatpush1.msra.mxu0 0.0
    %923 = vmatprep.subr.mxu0 0.0
    %924 = vmatpush1.msra.mxu0 0.0
    %925 = vmatprep.subr.mxu0 0.0
    %926 = vmatpush1.msra.mxu0 0.0
    %927 = vmatprep.subr.mxu0 0.0
    %928 = vmatpush1.msra.mxu0 0.0
    %929 = vmatprep.subr.mxu0 0.0
    %930 = vmatpush1.msra.mxu0 0.0
    %931 = vmatprep.subr.mxu0 0.0
    %932 = vmatpush1.msra.mxu0 0.0
    %933 = vmatprep.subr.mxu0 0.0
    %934 = vmatpush1.msra.mxu0 0.0
    %935 = vmatprep.subr.mxu0 0.0
    %936 = vmatpush1.msra.mxu0 0.0
    %937 = vmatprep.subr.mxu0 0.0
    %938 = vmatpush1.msra.mxu0 0.0
    %939 = vmatprep.subr.mxu0 0.0
    %940 = vmatpush1.msra.mxu0 0.0
    %941 = vmatprep.subr.mxu0 0.0
    %942 = vmatpush1.msra.mxu0 0.0
    %943 = vmatprep.mubr.f32.mxu0 0.0
    %944 = vmatmul.mubr.f32.gmra.mrb[0].mxu0 %v41
    %v945 = vpop.f32.mrb[0].mxu0
    %v946 = vadd.f32 0.0, %v945
    %v947 = vpop.f32.mrb[0].mxu0
    %948 = vmatprep.mubr.f32.mxu0 0.0
    %949 = vmatmul.mubr.f32.gmra.mrb[0].mxu0 %v44
    %v950 = vpop.f32.mrb[0].mxu0
    %v951 = vadd.f32 0.0, %v950
    %v952 = vpop.f32.mrb[0].mxu0
    %953 = vmatprep.mubr.f32.mxu0 0.0
    %954 = vmatmul.mubr.f32.gmra.mrb[0].mxu0 %v47
    %v955 = vpop.f32.mrb[0].mxu0
    %v956 = vadd.f32 0.0, %v955
    %v957 = vpop.f32.mrb[0].mxu0
    %958 = vmatprep.mubr.f32.mxu0 0.0
    %959 = vmatmul.mubr.f32.gmra.mrb[0].mxu0 %v50
    %v960 = vpop.f32.mrb[0].mxu0
    %v961 = vadd.f32 0.0, %v960
    %v962 = vpop.f32.mrb[0].mxu0
    %963 = vmatprep.mubr.f32.mxu0 0.0
    %964 = vmatmul.mubr.f32.gmra.mrb[0].mxu0 %v53
    %v965 = vpop.f32.mrb[0].mxu0
    %v966 = vadd.f32 0.0, %v965
    %v967 = vpop.f32.mrb[0].mxu0
    %968 = vmatprep.mubr.f32.mxu0 0.0
    %969 = vmatmul.mubr.f32.gmra.mrb[0].mxu0 %v56
    %v970 = vpop.f32.mrb[0].mxu0
    %v971 = vadd.f32 0.0, %v970
    %v972 = vpop.f32.mrb[0].mxu0
    %973 = vmatprep.mubr.f32.mxu0 0.0
    %974 = vmatmul.mubr.f32.gmra.mrb[0].mxu0 %v59
    %v975 = vpop.f32.mrb[0].mxu0
    %v976 = vadd.f32 0.0, %v975
    %v977 = vpop.f32.mrb[0].mxu0
    %978 = vmatprep.mubr.f32.mxu0 0.0
    %979 = vmatmul.mubr.f32.gmra.mrb[0].mxu0 %v62
    %v980 = vpop.f32.mrb[0].mxu0
    %v981 = vadd.f32 0.0, %v980
    %v982 = vpop.f32.mrb[0].mxu0
    %983 = vmatprep.mubr.f32.mxu0 0.0
    %984 = vmatmul.mubr.f32.gmra.mrb[0].mxu0 %v65
    %v985 = vpop.f32.mrb[0].mxu0
    %v986 = vadd.f32 0.0, %v985
    %v987 = vpop.f32.mrb[0].mxu0
    %988 = vmatprep.mubr.f32.mxu0 0.0
    %989 = vmatmul.mubr.f32.gmra.mrb[0].mxu0 %v68
    %v990 = vpop.f32.mrb[0].mxu0
    %v991 = vadd.f32 0.0, %v990
    %v992 = vpop.f32.mrb[0].mxu0
    %993 = vmatprep.mubr.f32.mxu0 0.0
    %994 = vmatmul.mubr.f32.gmra.mrb[0].mxu0 %v71
    %v995 = vpop.f32.mrb[0].mxu0
    %v996 = vadd.f32 0.0, %v995
    %v997 = vpop.f32.mrb[0].mxu0
    %998 = vmatprep.mubr.f32.mxu0 0.0
    %999 = vmatmul.mubr.f32.gmra.mrb[0].mxu0 %v74
    %v1000 = vpop.f32.mrb[0].mxu0
    %v1001 = vadd.f32 0.0, %v1000
    %v1002 = vpop.f32.mrb[0].mxu0
    %1003 = vdwg.mxu0
    %1004 = vrot.lane.b32.xlu0 %v946, 1
    %v1005 = vpop.permute.xlu0 %1004
    %1006 = vrot.lane.b32.xlu0 %v951, 1
    %v1007 = vpop.permute.xlu0 %1006
    %1008 = vrot.lane.b32.xlu0 %v956, 1
    %v1009 = vpop.permute.xlu0 %1008
    %1010 = vrot.lane.b32.xlu0 %v961, 1
    %v1011 = vpop.permute.xlu0 %1010
    %v1012 = vsel %vm210, 0.0, %v1005
    %v1013 = vsel %vm210, 0.0, %v1007
    %v1014 = vsel %vm210, 0.0, %v1009
    %v1015 = vsel %vm210, 0.0, %v1011
    %1016 = vrot.lane.b32.xlu0 %v986, 127
    %v1017 = vpop.permute.xlu0 %1016
    %1018 = vrot.lane.b32.xlu0 %v991, 127
    %v1019 = vpop.permute.xlu0 %1018
    %1020 = vrot.lane.b32.xlu0 %v996, 127
    %v1021 = vpop.permute.xlu0 %1020
    %1022 = vrot.lane.b32.xlu0 %v1001, 127
    %v1023 = vpop.permute.xlu0 %1022
    %v1024 = vsel %vm224, 0.0, %v1017
    %v1025 = vsel %vm224, 0.0, %v1019
    %v1026 = vsel %vm224, 0.0, %v1021
    %v1027 = vsel %vm224, 0.0, %v1023
    %v1028 = vadd.f32 %v1012, %v966
    %v1029 = vadd.f32 %v1013, %v971
    %v1030 = vadd.f32 %v1014, %v976
    %v1031 = vadd.f32 %v1015, %v981
    %v1032 = vadd.f32 %v1028, %v1024
    %v1033 = vadd.f32 %v1029, %v1025
    %v1034 = vadd.f32 %v1030, %v1026
    %v1035 = vadd.f32 %v1031, %v1027
    %v1036 = vadd.f32 %v1032, %v240
    %v1037 = vadd.f32 %v1033, %v245
    %v1038 = vadd.f32 %v1034, %v250
    %v1039 = vadd.f32 %v1035, %v255
    %v1040 = vmax.f32 %v1036, 0.0
    %v1041 = vmax.f32 %v1037, 0.0
    %v1042 = vmax.f32 %v1038, 0.0
    %v1043 = vmax.f32 %v1039, 0.0
    %1044 = vmatprep.subr.mxu0 0.0
    %1045 = vmatpush1.msra.mxu0 %v1040
    %1046 = vmatprep.subr.mxu0 0.0
    %1047 = vmatpush1.msra.mxu0 %v1041
    %1048 = vmatprep.subr.mxu0 0.0
    %1049 = vmatpush1.msra.mxu0 %v1042
    %1050 = vmatprep.subr.mxu0 0.0
    %1051 = vmatpush1.msra.mxu0 %v1043
    %1052 = vmatprep.subr.mxu0 0.0
    %1053 = vmatpush1.msra.mxu0 0.0
    %1054 = vmatprep.subr.mxu0 0.0
    %1055 = vmatpush1.msra.mxu0 0.0
    %1056 = vmatprep.subr.mxu0 0.0
    %1057 = vmatpush1.msra.mxu0 0.0
    %1058 = vmatprep.subr.mxu0 0.0
    %1059 = vmatpush1.msra.mxu0 0.0
    %1060 = vmatprep.subr.mxu0 0.0
    %1061 = vmatpush1.msra.mxu0 0.0
    %1062 = vmatprep.subr.mxu0 0.0
    %1063 = vmatpush1.msra.mxu0 0.0
    %1064 = vmatprep.subr.mxu0 0.0
    %1065 = vmatpush1.msra.mxu0 0.0
    %1066 = vmatprep.subr.mxu0 0.0
    %1067 = vmatpush1.msra.mxu0 0.0
    %1068 = vmatprep.subr.mxu0 0.0
    %1069 = vmatpush1.msra.mxu0 0.0
    %1070 = vmatprep.subr.mxu0 0.0
    %1071 = vmatpush1.msra.mxu0 0.0
    %1072 = vmatprep.subr.mxu0 0.0
    %1073 = vmatpush1.msra.mxu0 0.0
    %1074 = vmatprep.subr.mxu0 0.0
    %1075 = vmatpush1.msra.mxu0 0.0
    %1076 = vmatprep.subr.mxu0 0.0
    %1077 = vmatpush1.msra.mxu0 0.0
    %1078 = vmatprep.subr.mxu0 0.0
    %1079 = vmatpush1.msra.mxu0 0.0
    %1080 = vmatprep.subr.mxu0 0.0
    %1081 = vmatpush1.msra.mxu0 0.0
    %1082 = vmatprep.subr.mxu0 0.0
    %1083 = vmatpush1.msra.mxu0 0.0
    %1084 = vmatprep.subr.mxu0 0.0
    %1085 = vmatpush1.msra.mxu0 0.0
    %1086 = vmatprep.subr.mxu0 0.0
    %1087 = vmatpush1.msra.mxu0 0.0
    %1088 = vmatprep.subr.mxu0 0.0
    %1089 = vmatpush1.msra.mxu0 0.0
    %1090 = vmatprep.subr.mxu0 0.0
    %1091 = vmatpush1.msra.mxu0 0.0
    %1092 = vmatprep.subr.mxu0 0.0
    %1093 = vmatpush1.msra.mxu0 0.0
    %1094 = vmatprep.subr.mxu0 0.0
    %1095 = vmatpush1.msra.mxu0 0.0
    %1096 = vmatprep.subr.mxu0 0.0
    %1097 = vmatpush1.msra.mxu0 0.0
    %1098 = vmatprep.subr.mxu0 0.0
    %1099 = vmatpush1.msra.mxu0 0.0
    %1100 = vmatprep.subr.mxu0 0.0
    %1101 = vmatpush1.msra.mxu0 0.0
    %1102 = vmatprep.subr.mxu0 0.0
    %1103 = vmatpush1.msra.mxu0 0.0
    %1104 = vmatprep.subr.mxu0 0.0
    %1105 = vmatpush1.msra.mxu0 0.0
    %1106 = vmatprep.subr.mxu0 0.0
    %1107 = vmatpush1.msra.mxu0 0.0
    %1108 = vmatprep.mubr.f32.mxu0 0.0
    %1109 = vmatmul.mubr.f32.gmra.mrb[0].mxu0 %v41
    %v1110 = vpop.f32.mrb[0].mxu0
    %v1111 = vadd.f32 0.0, %v1110
    %v1112 = vpop.f32.mrb[0].mxu0
    %1113 = vmatprep.mubr.f32.mxu0 0.0
    %1114 = vmatmul.mubr.f32.gmra.mrb[0].mxu0 %v44
    %v1115 = vpop.f32.mrb[0].mxu0
    %v1116 = vadd.f32 0.0, %v1115
    %v1117 = vpop.f32.mrb[0].mxu0
    %1118 = vmatprep.mubr.f32.mxu0 0.0
    %1119 = vmatmul.mubr.f32.gmra.mrb[0].mxu0 %v47
    %v1120 = vpop.f32.mrb[0].mxu0
    %v1121 = vadd.f32 0.0, %v1120
    %v1122 = vpop.f32.mrb[0].mxu0
    %1123 = vmatprep.mubr.f32.mxu0 0.0
    %1124 = vmatmul.mubr.f32.gmra.mrb[0].mxu0 %v50
    %v1125 = vpop.f32.mrb[0].mxu0
    %v1126 = vadd.f32 0.0, %v1125
    %v1127 = vpop.f32.mrb[0].mxu0
    %1128 = vmatprep.mubr.f32.mxu0 0.0
    %1129 = vmatmul.mubr.f32.gmra.mrb[0].mxu0 %v53
    %v1130 = vpop.f32.mrb[0].mxu0
    %v1131 = vadd.f32 0.0, %v1130
    %v1132 = vpop.f32.mrb[0].mxu0
    %1133 = vmatprep.mubr.f32.mxu0 0.0
    %1134 = vmatmul.mubr.f32.gmra.mrb[0].mxu0 %v56
    %v1135 = vpop.f32.mrb[0].mxu0
    %v1136 = vadd.f32 0.0, %v1135
    %v1137 = vpop.f32.mrb[0].mxu0
    %1138 = vmatprep.mubr.f32.mxu0 0.0
    %1139 = vmatmul.mubr.f32.gmra.mrb[0].mxu0 %v59
    %v1140 = vpop.f32.mrb[0].mxu0
    %v1141 = vadd.f32 0.0, %v1140
    %v1142 = vpop.f32.mrb[0].mxu0
    %1143 = vmatprep.mubr.f32.mxu0 0.0
    %1144 = vmatmul.mubr.f32.gmra.mrb[0].mxu0 %v62
    %v1145 = vpop.f32.mrb[0].mxu0
    %v1146 = vadd.f32 0.0, %v1145
    %v1147 = vpop.f32.mrb[0].mxu0
    %1148 = vmatprep.mubr.f32.mxu0 0.0
    %1149 = vmatmul.mubr.f32.gmra.mrb[0].mxu0 %v65
    %v1150 = vpop.f32.mrb[0].mxu0
    %v1151 = vadd.f32 0.0, %v1150
    %v1152 = vpop.f32.mrb[0].mxu0
    %1153 = vmatprep.mubr.f32.mxu0 0.0
    %1154 = vmatmul.mubr.f32.gmra.mrb[0].mxu0 %v68
    %v1155 = vpop.f32.mrb[0].mxu0
    %v1156 = vadd.f32 0.0, %v1155
    %v1157 = vpop.f32.mrb[0].mxu0
    %1158 = vmatprep.mubr.f32.mxu0 0.0
    %1159 = vmatmul.mubr.f32.gmra.mrb[0].mxu0 %v71
    %v1160 = vpop.f32.mrb[0].mxu0
    %v1161 = vadd.f32 0.0, %v1160
    %v1162 = vpop.f32.mrb[0].mxu0
    %1163 = vmatprep.mubr.f32.mxu0 0.0
    %1164 = vmatmul.mubr.f32.gmra.mrb[0].mxu0 %v74
    %v1165 = vpop.f32.mrb[0].mxu0
    %v1166 = vadd.f32 0.0, %v1165
    %v1167 = vpop.f32.mrb[0].mxu0
    %1168 = vdwg.mxu0
    %1169 = vrot.lane.b32.xlu0 %v1111, 1
    %v1170 = vpop.permute.xlu0 %1169
    %1171 = vrot.lane.b32.xlu0 %v1116, 1
    %v1172 = vpop.permute.xlu0 %1171
    %1173 = vrot.lane.b32.xlu0 %v1121, 1
    %v1174 = vpop.permute.xlu0 %1173
    %1175 = vrot.lane.b32.xlu0 %v1126, 1
    %v1176 = vpop.permute.xlu0 %1175
    %v1177 = vsel %vm210, 0.0, %v1170
    %v1178 = vsel %vm210, 0.0, %v1172
    %v1179 = vsel %vm210, 0.0, %v1174
    %v1180 = vsel %vm210, 0.0, %v1176
    %1181 = vrot.lane.b32.xlu0 %v1151, 127
    %v1182 = vpop.permute.xlu0 %1181
    %1183 = vrot.lane.b32.xlu0 %v1156, 127
    %v1184 = vpop.permute.xlu0 %1183
    %1185 = vrot.lane.b32.xlu0 %v1161, 127
    %v1186 = vpop.permute.xlu0 %1185
    %1187 = vrot.lane.b32.xlu0 %v1166, 127
    %v1188 = vpop.permute.xlu0 %1187
    %v1189 = vsel %vm224, 0.0, %v1182
    %v1190 = vsel %vm224, 0.0, %v1184
    %v1191 = vsel %vm224, 0.0, %v1186
    %v1192 = vsel %vm224, 0.0, %v1188
    %v1193 = vadd.f32 %v1177, %v1131
    %v1194 = vadd.f32 %v1178, %v1136
    %v1195 = vadd.f32 %v1179, %v1141
    %v1196 = vadd.f32 %v1180, %v1146
    %v1197 = vadd.f32 %v1193, %v1189
    %v1198 = vadd.f32 %v1194, %v1190
    %v1199 = vadd.f32 %v1195, %v1191
    %v1200 = vadd.f32 %v1196, %v1192
    %v1201 = vadd.f32 %v1197, %v240
    %v1202 = vadd.f32 %v1198, %v245
    %v1203 = vadd.f32 %v1199, %v250
    %v1204 = vadd.f32 %v1200, %v255
    %v1205 = vadd.f32 %v1201, %v875
    %v1206 = vadd.f32 %v1202, %v876
    %v1207 = vadd.f32 %v1203, %v877
    %v1208 = vadd.f32 %v1204, %v878
    %v1209 = vmax.f32 %v1205, 0.0
    %v1210 = vmax.f32 %v1206, 0.0
    %v1211 = vmax.f32 %v1207, 0.0
    %v1212 = vmax.f32 %v1208, 0.0
    %v1213 = vadd.f32 %v1209, %v1210
    %v1214 = vadd.f32 %v1213, %v1211
    %v1215 = vadd.f32 %v1214, %v1212
    %1216 = vadd.xlane.f32.xlu0 %v1215
    %v1217 = vpop.xlane.xlu0 %1216
    %v1218 = vrot.slane %v1217, 4
    %v1219 = vadd.f32 %v1217, %v1218
    %v1220 = vrot.slane %v1219, 2
    %v1221 = vadd.f32 %v1219, %v1220
    %v1222 = vrot.slane %v1221, 1
    %v1223 = vadd.f32 %v1221, %v1222
    %s1224 = vtos %v1223
    %v1225 = vmul.f32 %v1209, %v1209
    %v1226 = vmul.f32 %v1210, %v1210
    %v1227 = vmul.f32 %v1211, %v1211
    %v1228 = vmul.f32 %v1212, %v1212
    %v1229 = vadd.f32 %v1225, %v1226
    %v1230 = vadd.f32 %v1229, %v1227
    %v1231 = vadd.f32 %v1230, %v1228
    %1232 = vadd.xlane.f32.xlu0 %v1231
    %v1233 = vpop.xlane.xlu0 %1232
    %v1234 = vrot.slane %v1233, 4
    %v1235 = vadd.f32 %v1233, %v1234
    %v1236 = vrot.slane %v1235, 2
    %v1237 = vadd.f32 %v1235, %v1236
    %v1238 = vrot.slane %v1237, 1
    %v1239 = vadd.f32 %v1237, %v1238
    %s1240 = vtos %v1239
    %s1241 = smul.f32 %s1224, 0.00024414063
    %s1242 = smul.f32 %s1240, 0.00024414063
    %s1243 = smul.f32 %s1241, %s1241
    %s1244 = ssub.f32 %s1242, %s1243
    %v1245 = vstv %s1241
    %v1246 = vsub.f32 %v1209, %v1245
    %v1247 = vsub.f32 %v1210, %v1245
    %v1248 = vsub.f32 %v1211, %v1245
    %v1249 = vsub.f32 %v1212, %v1245
    %s1250 = sadd.f32 %s1244, 1e-05
    %v1251 = vstv %s1250
    %v1252 = vrsqrt.pop %v1251
    %s1253 = vtos %v1252
    %v1254 = vstv %s1253
    %v1255 = vmul.f32 %v1246, %v1254
    %v1256 = vmul.f32 %v1247, %v1254
    %v1257 = vmul.f32 %v1248, %v1254
    %v1258 = vmul.f32 %v1249, %v1254
    %s1259 = scalar_lea.vmem [#allocation2], 64
    %1260 = vst [vmem:[%s1259] sm:$0xff] %v1255
    %1261 = vst [vmem:[%s1259 + $0x8] sm:$0xff] %v1256
    %1262 = vst [vmem:[%s1259 + $0x10] sm:$0xff] %v1257
    %1263 = vst [vmem:[%s1259 + $0x18] sm:$0xff] %v1258
    %s1264 = scalar_lea.vmem %s0, 96
    %v1265 = vld [vmem:[%s1264] sm:$0xff]
    %v1266 = vld [vmem:[%s1264 + $0x8] sm:$0xff]
    %v1267 = vld [vmem:[%s1264 + $0x10] sm:$0xff]
    %v1268 = vld [vmem:[%s1264 + $0x18] sm:$0xff]
    %1269 = vmatprep.subr.mxu0 0.0
    %1270 = vmatpush1.msra.mxu0 %v1265
    %1271 = vmatprep.subr.mxu0 0.0
    %1272 = vmatpush1.msra.mxu0 %v1266
    %1273 = vmatprep.subr.mxu0 0.0
    %1274 = vmatpush1.msra.mxu0 %v1267
    %1275 = vmatprep.subr.mxu0 0.0
    %1276 = vmatpush1.msra.mxu0 %v1268
    %1277 = vmatprep.subr.mxu0 0.0
    %1278 = vmatpush1.msra.mxu0 0.0
    %1279 = vmatprep.subr.mxu0 0.0
    %1280 = vmatpush1.msra.mxu0 0.0
    %1281 = vmatprep.subr.mxu0 0.0
    %1282 = vmatpush1.msra.mxu0 0.0
    %1283 = vmatprep.subr.mxu0 0.0
    %1284 = vmatpush1.msra.mxu0 0.0
    %1285 = vmatprep.subr.mxu0 0.0
    %1286 = vmatpush1.msra.mxu0 0.0
    %1287 = vmatprep.subr.mxu0 0.0
    %1288 = vmatpush1.msra.mxu0 0.0
    %1289 = vmatprep.subr.mxu0 0.0
    %1290 = vmatpush1.msra.mxu0 0.0
    %1291 = vmatprep.subr.mxu0 0.0
    %1292 = vmatpush1.msra.mxu0 0.0
    %1293 = vmatprep.subr.mxu0 0.0
    %1294 = vmatpush1.msra.mxu0 0.0
    %1295 = vmatprep.subr.mxu0 0.0
    %1296 = vmatpush1.msra.mxu0 0.0
    %1297 = vmatprep.subr.mxu0 0.0
    %1298 = vmatpush1.msra.mxu0 0.0
    %1299 = vmatprep.subr.mxu0 0.0
    %1300 = vmatpush1.msra.mxu0 0.0
    %1301 = vmatprep.subr.mxu0 0.0
    %1302 = vmatpush1.msra.mxu0 0.0
    %1303 = vmatprep.subr.mxu0 0.0
    %1304 = vmatpush1.msra.mxu0 0.0
    %1305 = vmatprep.subr.mxu0 0.0
    %1306 = vmatpush1.msra.mxu0 0.0
    %1307 = vmatprep.subr.mxu0 0.0
    %1308 = vmatpush1.msra.mxu0 0.0
    %1309 = vmatprep.subr.mxu0 0.0
    %1310 = vmatpush1.msra.mxu0 0.0
    %1311 = vmatprep.subr.mxu0 0.0
    %1312 = vmatpush1.msra.mxu0 0.0
    %1313 = vmatprep.subr.mxu0 0.0
    %1314 = vmatpush1.msra.mxu0 0.0
    %1315 = vmatprep.subr.mxu0 0.0
    %1316 = vmatpush1.msra.mxu0 0.0
    %1317 = vmatprep.subr.mxu0 0.0
    %1318 = vmatpush1.msra.mxu0 0.0
    %1319 = vmatprep.subr.mxu0 0.0
    %1320 = vmatpush1.msra.mxu0 0.0
    %1321 = vmatprep.subr.mxu0 0.0
    %1322 = vmatpush1.msra.mxu0 0.0
    %1323 = vmatprep.subr.mxu0 0.0
    %1324 = vmatpush1.msra.mxu0 0.0
    %1325 = vmatprep.subr.mxu0 0.0
    %1326 = vmatpush1.msra.mxu0 0.0
    %1327 = vmatprep.subr.mxu0 0.0
    %1328 = vmatpush1.msra.mxu0 0.0
    %1329 = vmatprep.subr.mxu0 0.0
    %1330 = vmatpush1.msra.mxu0 0.0
    %1331 = vmatprep.subr.mxu0 0.0
    %1332 = vmatpush1.msra.mxu0 0.0
    %1333 = vmatprep.mubr.f32.mxu0 0.0
    %1334 = vmatmul.mubr.f32.gmra.mrb[0].mxu0 %v41
    %v1335 = vpop.f32.mrb[0].mxu0
    %v1336 = vadd.f32 0.0, %v1335
    %v1337 = vpop.f32.mrb[0].mxu0
    %1338 = vmatprep.mubr.f32.mxu0 0.0
    %1339 = vmatmul.mubr.f32.gmra.mrb[0].mxu0 %v44
    %v1340 = vpop.f32.mrb[0].mxu0
    %v1341 = vadd.f32 0.0, %v1340
    %v1342 = vpop.f32.mrb[0].mxu0
    %1343 = vmatprep.mubr.f32.mxu0 0.0
    %1344 = vmatmul.mubr.f32.gmra.mrb[0].mxu0 %v47
    %v1345 = vpop.f32.mrb[0].mxu0
    %v1346 = vadd.f32 0.0, %v1345
    %v1347 = vpop.f32.mrb[0].mxu0
    %1348 = vmatprep.mubr.f32.mxu0 0.0
    %1349 = vmatmul.mubr.f32.gmra.mrb[0].mxu0 %v50
    %v1350 = vpop.f32.mrb[0].mxu0
    %v1351 = vadd.f32 0.0, %v1350
    %v1352 = vpop.f32.mrb[0].mxu0
    %1353 = vmatprep.mubr.f32.mxu0 0.0
    %1354 = vmatmul.mubr.f32.gmra.mrb[0].mxu0 %v53
    %v1355 = vpop.f32.mrb[0].mxu0
    %v1356 = vadd.f32 0.0, %v1355
    %v1357 = vpop.f32.mrb[0].mxu0
    %1358 = vmatprep.mubr.f32.mxu0 0.0
    %1359 = vmatmul.mubr.f32.gmra.mrb[0].mxu0 %v56
    %v1360 = vpop.f32.mrb[0].mxu0
    %v1361 = vadd.f32 0.0, %v1360
    %v1362 = vpop.f32.mrb[0].mxu0
    %1363 = vmatprep.mubr.f32.mxu0 0.0
    %1364 = vmatmul.mubr.f32.gmra.mrb[0].mxu0 %v59
    %v1365 = vpop.f32.mrb[0].mxu0
    %v1366 = vadd.f32 0.0, %v1365
    %v1367 = vpop.f32.mrb[0].mxu0
    %1368 = vmatprep.mubr.f32.mxu0 0.0
    %1369 = vmatmul.mubr.f32.gmra.mrb[0].mxu0 %v62
    %v1370 = vpop.f32.mrb[0].mxu0
    %v1371 = vadd.f32 0.0, %v1370
    %v1372 = vpop.f32.mrb[0].mxu0
    %1373 = vmatprep.mubr.f32.mxu0 0.0
    %1374 = vmatmul.mubr.f32.gmra.mrb[0].mxu0 %v65
    %v1375 = vpop.f32.mrb[0].mxu0
    %v1376 = vadd.f32 0.0, %v1375
    %v1377 = vpop.f32.mrb[0].mxu0
    %1378 = vmatprep.mubr.f32.mxu0 0.0
    %1379 = vmatmul.mubr.f32.gmra.mrb[0].mxu0 %v68
    %v1380 = vpop.f32.mrb[0].mxu0
    %v1381 = vadd.f32 0.0, %v1380
    %v1382 = vpop.f32.mrb[0].mxu0
    %1383 = vmatprep.mubr.f32.mxu0 0.0
    %1384 = vmatmul.mubr.f32.gmra.mrb[0].mxu0 %v71
    %v1385 = vpop.f32.mrb[0].mxu0
    %v1386 = vadd.f32 0.0, %v1385
    %v1387 = vpop.f32.mrb[0].mxu0
    %1388 = vmatprep.mubr.f32.mxu0 0.0
    %1389 = vmatmul.mubr.f32.gmra.mrb[0].mxu0 %v74
    %v1390 = vpop.f32.mrb[0].mxu0
    %v1391 = vadd.f32 0.0, %v1390
    %v1392 = vpop.f32.mrb[0].mxu0
    %1393 = vdwg.mxu0
    %1394 = vrot.lane.b32.xlu0 %v1336, 1
    %v1395 = vpop.permute.xlu0 %1394
    %1396 = vrot.lane.b32.xlu0 %v1341, 1
    %v1397 = vpop.permute.xlu0 %1396
    %1398 = vrot.lane.b32.xlu0 %v1346, 1
    %v1399 = vpop.permute.xlu0 %1398
    %1400 = vrot.lane.b32.xlu0 %v1351, 1
    %v1401 = vpop.permute.xlu0 %1400
    %v1402 = vsel %vm210, 0.0, %v1395
    %v1403 = vsel %vm210, 0.0, %v1397
    %v1404 = vsel %vm210, 0.0, %v1399
    %v1405 = vsel %vm210, 0.0, %v1401
    %1406 = vrot.lane.b32.xlu0 %v1376, 127
    %v1407 = vpop.permute.xlu0 %1406
    %1408 = vrot.lane.b32.xlu0 %v1381, 127
    %v1409 = vpop.permute.xlu0 %1408
    %1410 = vrot.lane.b32.xlu0 %v1386, 127
    %v1411 = vpop.permute.xlu0 %1410
    %1412 = vrot.lane.b32.xlu0 %v1391, 127
    %v1413 = vpop.permute.xlu0 %1412
    %v1414 = vsel %vm224, 0.0, %v1407
    %v1415 = vsel %vm224, 0.0, %v1409
    %v1416 = vsel %vm224, 0.0, %v1411
    %v1417 = vsel %vm224, 0.0, %v1413
    %v1418 = vadd.f32 %v1402, %v1356
    %v1419 = vadd.f32 %v1403, %v1361
    %v1420 = vadd.f32 %v1404, %v1366
    %v1421 = vadd.f32 %v1405, %v1371
    %v1422 = vadd.f32 %v1418, %v1414
    %v1423 = vadd.f32 %v1419, %v1415
    %v1424 = vadd.f32 %v1420, %v1416
    %v1425 = vadd.f32 %v1421, %v1417
    %v1426 = vadd.f32 %v1422, %v240
    %v1427 = vadd.f32 %v1423, %v245
    %v1428 = vadd.f32 %v1424, %v250
    %v1429 = vadd.f32 %v1425, %v255
    %v1430 = vmax.f32 %v1426, 0.0
    %v1431 = vmax.f32 %v1427, 0.0
    %v1432 = vmax.f32 %v1428, 0.0
    %v1433 = vmax.f32 %v1429, 0.0
    %1434 = vmatprep.subr.mxu0 0.0
    %1435 = vmatpush1.msra.mxu0 %v1430
    %1436 = vmatprep.subr.mxu0 0.0
    %1437 = vmatpush1.msra.mxu0 %v1431
    %1438 = vmatprep.subr.mxu0 0.0
    %1439 = vmatpush1.msra.mxu0 %v1432
    %1440 = vmatprep.subr.mxu0 0.0
    %1441 = vmatpush1.msra.mxu0 %v1433
    %1442 = vmatprep.subr.mxu0 0.0
    %1443 = vmatpush1.msra.mxu0 0.0
    %1444 = vmatprep.subr.mxu0 0.0
    %1445 = vmatpush1.msra.mxu0 0.0
    %1446 = vmatprep.subr.mxu0 0.0
    %1447 = vmatpush1.msra.mxu0 0.0
    %1448 = vmatprep.subr.mxu0 0.0
    %1449 = vmatpush1.msra.mxu0 0.0
    %1450 = vmatprep.subr.mxu0 0.0
    %1451 = vmatpush1.msra.mxu0 0.0
    %1452 = vmatprep.subr.mxu0 0.0
    %1453 = vmatpush1.msra.mxu0 0.0
    %1454 = vmatprep.subr.mxu0 0.0
    %1455 = vmatpush1.msra.mxu0 0.0
    %1456 = vmatprep.subr.mxu0 0.0
    %1457 = vmatpush1.msra.mxu0 0.0
    %1458 = vmatprep.subr.mxu0 0.0
    %1459 = vmatpush1.msra.mxu0 0.0
    %1460 = vmatprep.subr.mxu0 0.0
    %1461 = vmatpush1.msra.mxu0 0.0
    %1462 = vmatprep.subr.mxu0 0.0
    %1463 = vmatpush1.msra.mxu0 0.0
    %1464 = vmatprep.subr.mxu0 0.0
    %1465 = vmatpush1.msra.mxu0 0.0
    %1466 = vmatprep.subr.mxu0 0.0
    %1467 = vmatpush1.msra.mxu0 0.0
    %1468 = vmatprep.subr.mxu0 0.0
    %1469 = vmatpush1.msra.mxu0 0.0
    %1470 = vmatprep.subr.mxu0 0.0
    %1471 = vmatpush1.msra.mxu0 0.0
    %1472 = vmatprep.subr.mxu0 0.0
    %1473 = vmatpush1.msra.mxu0 0.0
    %1474 = vmatprep.subr.mxu0 0.0
    %1475 = vmatpush1.msra.mxu0 0.0
    %1476 = vmatprep.subr.mxu0 0.0
    %1477 = vmatpush1.msra.mxu0 0.0
    %1478 = vmatprep.subr.mxu0 0.0
    %1479 = vmatpush1.msra.mxu0 0.0
    %1480 = vmatprep.subr.mxu0 0.0
    %1481 = vmatpush1.msra.mxu0 0.0
    %1482 = vmatprep.subr.mxu0 0.0
    %1483 = vmatpush1.msra.mxu0 0.0
    %1484 = vmatprep.subr.mxu0 0.0
    %1485 = vmatpush1.msra.mxu0 0.0
    %1486 = vmatprep.subr.mxu0 0.0
    %1487 = vmatpush1.msra.mxu0 0.0
    %1488 = vmatprep.subr.mxu0 0.0
    %1489 = vmatpush1.msra.mxu0 0.0
    %1490 = vmatprep.subr.mxu0 0.0
    %1491 = vmatpush1.msra.mxu0 0.0
    %1492 = vmatprep.subr.mxu0 0.0
    %1493 = vmatpush1.msra.mxu0 0.0
    %1494 = vmatprep.subr.mxu0 0.0
    %1495 = vmatpush1.msra.mxu0 0.0
    %1496 = vmatprep.subr.mxu0 0.0
    %1497 = vmatpush1.msra.mxu0 0.0
    %1498 = vmatprep.mubr.f32.mxu0 0.0
    %1499 = vmatmul.mubr.f32.gmra.mrb[0].mxu0 %v41
    %v1500 = vpop.f32.mrb[0].mxu0
    %v1501 = vadd.f32 0.0, %v1500
    %v1502 = vpop.f32.mrb[0].mxu0
    %1503 = vmatprep.mubr.f32.mxu0 0.0
    %1504 = vmatmul.mubr.f32.gmra.mrb[0].mxu0 %v44
    %v1505 = vpop.f32.mrb[0].mxu0
    %v1506 = vadd.f32 0.0, %v1505
    %v1507 = vpop.f32.mrb[0].mxu0
    %1508 = vmatprep.mubr.f32.mxu0 0.0
    %1509 = vmatmul.mubr.f32.gmra.mrb[0].mxu0 %v47
    %v1510 = vpop.f32.mrb[0].mxu0
    %v1511 = vadd.f32 0.0, %v1510
    %v1512 = vpop.f32.mrb[0].mxu0
    %1513 = vmatprep.mubr.f32.mxu0 0.0
    %1514 = vmatmul.mubr.f32.gmra.mrb[0].mxu0 %v50
    %v1515 = vpop.f32.mrb[0].mxu0
    %v1516 = vadd.f32 0.0, %v1515
    %v1517 = vpop.f32.mrb[0].mxu0
    %1518 = vmatprep.mubr.f32.mxu0 0.0
    %1519 = vmatmul.mubr.f32.gmra.mrb[0].mxu0 %v53
    %v1520 = vpop.f32.mrb[0].mxu0
    %v1521 = vadd.f32 0.0, %v1520
    %v1522 = vpop.f32.mrb[0].mxu0
    %1523 = vmatprep.mubr.f32.mxu0 0.0
    %1524 = vmatmul.mubr.f32.gmra.mrb[0].mxu0 %v56
    %v1525 = vpop.f32.mrb[0].mxu0
    %v1526 = vadd.f32 0.0, %v1525
    %v1527 = vpop.f32.mrb[0].mxu0
    %1528 = vmatprep.mubr.f32.mxu0 0.0
    %1529 = vmatmul.mubr.f32.gmra.mrb[0].mxu0 %v59
    %v1530 = vpop.f32.mrb[0].mxu0
    %v1531 = vadd.f32 0.0, %v1530
    %v1532 = vpop.f32.mrb[0].mxu0
    %1533 = vmatprep.mubr.f32.mxu0 0.0
    %1534 = vmatmul.mubr.f32.gmra.mrb[0].mxu0 %v62
    %v1535 = vpop.f32.mrb[0].mxu0
    %v1536 = vadd.f32 0.0, %v1535
    %v1537 = vpop.f32.mrb[0].mxu0
    %1538 = vmatprep.mubr.f32.mxu0 0.0
    %1539 = vmatmul.mubr.f32.gmra.mrb[0].mxu0 %v65
    %v1540 = vpop.f32.mrb[0].mxu0
    %v1541 = vadd.f32 0.0, %v1540
    %v1542 = vpop.f32.mrb[0].mxu0
    %1543 = vmatprep.mubr.f32.mxu0 0.0
    %1544 = vmatmul.mubr.f32.gmra.mrb[0].mxu0 %v68
    %v1545 = vpop.f32.mrb[0].mxu0
    %v1546 = vadd.f32 0.0, %v1545
    %v1547 = vpop.f32.mrb[0].mxu0
    %1548 = vmatprep.mubr.f32.mxu0 0.0
    %1549 = vmatmul.mubr.f32.gmra.mrb[0].mxu0 %v71
    %v1550 = vpop.f32.mrb[0].mxu0
    %v1551 = vadd.f32 0.0, %v1550
    %v1552 = vpop.f32.mrb[0].mxu0
    %1553 = vmatprep.mubr.f32.mxu0 0.0
    %1554 = vmatmul.mubr.f32.gmra.mrb[0].mxu0 %v74
    %v1555 = vpop.f32.mrb[0].mxu0
    %v1556 = vadd.f32 0.0, %v1555
    %v1557 = vpop.f32.mrb[0].mxu0
    %1558 = vdwg.mxu0
    %1559 = vrot.lane.b32.xlu0 %v1501, 1
    %v1560 = vpop.permute.xlu0 %1559
    %1561 = vrot.lane.b32.xlu0 %v1506, 1
    %v1562 = vpop.permute.xlu0 %1561
    %1563 = vrot.lane.b32.xlu0 %v1511, 1
    %v1564 = vpop.permute.xlu0 %1563
    %1565 = vrot.lane.b32.xlu0 %v1516, 1
    %v1566 = vpop.permute.xlu0 %1565
    %v1567 = vsel %vm210, 0.0, %v1560
    %v1568 = vsel %vm210, 0.0, %v1562
    %v1569 = vsel %vm210, 0.0, %v1564
    %v1570 = vsel %vm210, 0.0, %v1566
    %1571 = vrot.lane.b32.xlu0 %v1541, 127
    %v1572 = vpop.permute.xlu0 %1571
    %1573 = vrot.lane.b32.xlu0 %v1546, 127
    %v1574 = vpop.permute.xlu0 %1573
    %1575 = vrot.lane.b32.xlu0 %v1551, 127
    %v1576 = vpop.permute.xlu0 %1575
    %1577 = vrot.lane.b32.xlu0 %v1556, 127
    %v1578 = vpop.permute.xlu0 %1577
    %v1579 = vsel %vm224, 0.0, %v1572
    %v1580 = vsel %vm224, 0.0, %v1574
    %v1581 = vsel %vm224, 0.0, %v1576
    %v1582 = vsel %vm224, 0.0, %v1578
    %v1583 = vadd.f32 %v1567, %v1521
    %v1584 = vadd.f32 %v1568, %v1526
    %v1585 = vadd.f32 %v1569, %v1531
    %v1586 = vadd.f32 %v1570, %v1536
    %v1587 = vadd.f32 %v1583, %v1579
    %v1588 = vadd.f32 %v1584, %v1580
    %v1589 = vadd.f32 %v1585, %v1581
    %v1590 = vadd.f32 %v1586, %v1582
    %v1591 = vadd.f32 %v1587, %v240
    %v1592 = vadd.f32 %v1588, %v245
    %v1593 = vadd.f32 %v1589, %v250
    %v1594 = vadd.f32 %v1590, %v255
    %v1595 = vadd.f32 %v1591, %v1265
    %v1596 = vadd.f32 %v1592, %v1266
    %v1597 = vadd.f32 %v1593, %v1267
    %v1598 = vadd.f32 %v1594, %v1268
    %v1599 = vmax.f32 %v1595, 0.0
    %v1600 = vmax.f32 %v1596, 0.0
    %v1601 = vmax.f32 %v1597, 0.0
    %v1602 = vmax.f32 %v1598, 0.0
    %v1603 = vadd.f32 %v1599, %v1600
    %v1604 = vadd.f32 %v1603, %v1601
    %v1605 = vadd.f32 %v1604, %v1602
    %1606 = vadd.xlane.f32.xlu0 %v1605
    %v1607 = vpop.xlane.xlu0 %1606
    %v1608 = vrot.slane %v1607, 4
    %v1609 = vadd.f32 %v1607, %v1608
    %v1610 = vrot.slane %v1609, 2
    %v1611 = vadd.f32 %v1609, %v1610
    %v1612 = vrot.slane %v1611, 1
    %v1613 = vadd.f32 %v1611, %v1612
    %s1614 = vtos %v1613
    %v1615 = vmul.f32 %v1599, %v1599
    %v1616 = vmul.f32 %v1600, %v1600
    %v1617 = vmul.f32 %v1601, %v1601
    %v1618 = vmul.f32 %v1602, %v1602
    %v1619 = vadd.f32 %v1615, %v1616
    %v1620 = vadd.f32 %v1619, %v1617
    %v1621 = vadd.f32 %v1620, %v1618
    %1622 = vadd.xlane.f32.xlu0 %v1621
    %v1623 = vpop.xlane.xlu0 %1622
    %v1624 = vrot.slane %v1623, 4
    %v1625 = vadd.f32 %v1623, %v1624
    %v1626 = vrot.slane %v1625, 2
    %v1627 = vadd.f32 %v1625, %v1626
    %v1628 = vrot.slane %v1627, 1
    %v1629 = vadd.f32 %v1627, %v1628
    %s1630 = vtos %v1629
    %s1631 = smul.f32 %s1614, 0.00024414063
    %s1632 = smul.f32 %s1630, 0.00024414063
    %s1633 = smul.f32 %s1631, %s1631
    %s1634 = ssub.f32 %s1632, %s1633
    %v1635 = vstv %s1631
    %v1636 = vsub.f32 %v1599, %v1635
    %v1637 = vsub.f32 %v1600, %v1635
    %v1638 = vsub.f32 %v1601, %v1635
    %v1639 = vsub.f32 %v1602, %v1635
    %s1640 = sadd.f32 %s1634, 1e-05
    %v1641 = vstv %s1640
    %v1642 = vrsqrt.pop %v1641
    %s1643 = vtos %v1642
    %v1644 = vstv %s1643
    %v1645 = vmul.f32 %v1636, %v1644
    %v1646 = vmul.f32 %v1637, %v1644
    %v1647 = vmul.f32 %v1638, %v1644
    %v1648 = vmul.f32 %v1639, %v1644
    %s1649 = scalar_lea.vmem [#allocation2], 96
    %1650 = vst [vmem:[%s1649] sm:$0xff] %v1645
    %1651 = vst [vmem:[%s1649 + $0x8] sm:$0xff] %v1646
    %1652 = vst [vmem:[%s1649 + $0x10] sm:$0xff] %v1647
    %1653 = vst [vmem:[%s1649 + $0x18] sm:$0xff] %v1648
    // Predicated region
    $region14: #{tpu_custom_call.1} parent=1 // pred_check
      _
    $region15: #{tpu_custom_call.1} parent=1 // pred_check_branch
      %1655 = sbr.rel (0) target = $region17
    $region16: #{tpu_custom_call.1} parent=1 // pred_region
      %s1657 = ssub.s32 2048, 2048
      %1658 = vsyncadd [#allocation3], %s1657
      %s1659 = sshll.u32 [#allocation2], 4
      %s1660 = int_to_ptr.vmem [resolvable:$true] %s1659
      %1665 = dma.vmem_to_hbm [thread:$0]  %s1660, 2048, %s3, [#allocation3], 128, 128, 8
    $region17: #{tpu_custom_call.1} parent=1 // pred_fallthru
      _
    // Predicated region
    $region18: #{tpu_custom_call.1} parent=1 // pred_check
      _
    $region19: #{tpu_custom_call.1} parent=1 // pred_check_branch
      %1667 = sbr.rel (0) target = $region21
    $region20: #{tpu_custom_call.1} parent=1 // pred_region
      %1668 = dma.done [#allocation3], 2048
    $region21: #{tpu_custom_call.1} parent=1 // pred_fallthru
      _
    %1669 = vsyncpa [#allocation3], 1

</llo_original>
